<compile_context>
chip_gen: v7x
topology: tpu7x:2x2x1
jax: 0.10.0
libtpu: 0.0.40
codegen_flags: <defaults>
</compile_context>

<pallas_src>
import numpy as np
import jax
import jax.numpy as jnp
from jax.experimental import pallas as pl
from jax.experimental.pallas import tpu as pltpu


# -----------------------------------------------------------------------------
# Pallas kernel: CBAM3D attention (HFF3D.att).  One grid step = block of Nb
# samples, laid out (Nb, C, S) with S = D*H*W (lane-dense, 512 = 4x128 lanes).
# -----------------------------------------------------------------------------
def _cbam3d_kernel(x_ref, w1_ref, b1_ref, w2_ref, b2_ref, t_ref, bn_ref, o_ref):
    x = x_ref[...].astype(jnp.float32)                        # (Nb, C, S)

    # ---- channel attention: GAP -> fc1 -> relu -> fc2 (no sigmoid, as in source) ----
    g = jnp.mean(x, axis=2)                                   # (Nb, C)
    h = jnp.dot(g, w1_ref[...], preferred_element_type=jnp.float32) + b1_ref[...]
    h = jnp.maximum(h, 0.0)                                   # ReLU
    att = jnp.dot(h, w2_ref[...], preferred_element_type=jnp.float32) + b2_ref[...]
    xc = x * att[:, :, None]                                  # channel-attended feature (s_in)

    # ---- spatial attention: ChannelPool -> baked 7x7x7 conv (one matmul) -> BN ----
    pmax = jnp.max(xc, axis=1)                                # (Nb, S)
    pmean = jnp.mean(xc, axis=1)                              # (Nb, S)
    pool = jnp.concatenate([pmax, pmean], axis=1)             # (Nb, 2S)   [max | mean]
    sp = jnp.dot(pool, t_ref[...], preferred_element_type=jnp.float32)   # (Nb, S)
    sp = sp * bn_ref[0, 0] + bn_ref[0, 1]                     # folded BatchNorm3d (eval)

    o_ref[...] = (xc * sp[:, None, :]).astype(o_ref.dtype)    # dense 512-lane store


def _bake_spatial_conv(w_sp, D, H, W):
    """Fold Conv3d(2->1, k=K, pad=(K-1)//2, bias=False) with zero padding into a dense
    (2*S, S) matrix T, S = D*H*W, such that  conv(cat([max, mean]))  ==  [max|mean] @ T
    (rows: channel-major input voxel, cols: output voxel)."""
    w_np = np.asarray(w_sp, np.float32)[0]                    # (2, K, K, K)
    K = w_np.shape[-1]
    P = (K - 1) // 2

    def taps(n):
        k = np.arange(n)[:, None] - np.arange(n)[None, :] + P   # tap index per (in, out)
        valid = (k >= 0) & (k < K)
        return np.clip(k, 0, K - 1), valid

    kd, vd = taps(D)
    kh, vh = taps(H)
    kw, vw = taps(W)
    t6 = w_np[:, kd[:, None, None, :, None, None],
                 kh[None, :, None, None, :, None],
                 kw[None, None, :, None, None, :]]            # (2, D, H, W, D, H, W)
    t6 = t6 * (vd[:, None, None, :, None, None]
               & vh[None, :, None, None, :, None]
               & vw[None, None, :, None, None, :])
    S = D * H * W
    return jnp.asarray(t6.reshape(2 * S, S))


def _choose_block_n(N):
    # Batch samples per grid step to amortize the ~0.35us/step overhead, but keep at
    # least 2 grid steps so both v7x TensorCores get "parallel" work.
    if N < 4:
        return 1
    bn = min(8, N // 2)
    while N % bn:
        bn -= 1
    return bn


def cbam3d_pallas(x, params, *, block_n=None):
    """CBAM3D(only_ch=0, only_sp=0) forward, x of shape (N, C, D, H, W)."""
    N, C, D, H, W = x.shape
    S = D * H * W
    w1, b1 = params["w1"], params["b1"]
    w2, b2 = params["w2"], params["b2"]
    Cr = w1.shape[0]
    if block_n is None:
        block_n = _choose_block_n(N)
    assert N % block_n == 0, (N, block_n)

    # glue: lane-dense layouts (pure reshapes / transposes, no compute hoisting)
    x2 = jnp.reshape(x, (N, C, S))
    w1m = jnp.asarray(w1, jnp.float32).reshape(Cr, C).T       # (C, Cr)
    b1r = jnp.asarray(b1, jnp.float32).reshape(1, Cr)
    w2m = jnp.asarray(w2, jnp.float32).reshape(C, Cr).T       # (Cr, C)
    b2r = jnp.asarray(b2, jnp.float32).reshape(1, C)
    t_sp = _bake_spatial_conv(params["w_sp"], D, H, W)        # (2S, S), resident once
    bn = jnp.stack([jnp.asarray(params["bn_scale"], jnp.float32),
                    jnp.asarray(params["bn_shift"], jnp.float32)]).reshape(1, 2)

    out2 = pl.pallas_call(
        _cbam3d_kernel,
        out_shape=jax.ShapeDtypeStruct((N, C, S), x.dtype),
        grid=(N // block_n,),
        in_specs=[
            pl.BlockSpec((block_n, C, S), lambda n: (n, 0, 0)),
            pl.BlockSpec((C, Cr), lambda n: (0, 0)),
            pl.BlockSpec((1, Cr), lambda n: (0, 0)),
            pl.BlockSpec((Cr, C), lambda n: (0, 0)),
            pl.BlockSpec((1, C), lambda n: (0, 0)),
            pl.BlockSpec((2 * S, S), lambda n: (0, 0)),
            pl.BlockSpec(memory_space=pltpu.MemorySpace.SMEM),
        ],
        out_specs=pl.BlockSpec((block_n, C, S), lambda n: (n, 0, 0)),
        compiler_params=pltpu.CompilerParams(dimension_semantics=("parallel",)),
    )(x2, w1m, b1r, w2m, b2r, t_sp, bn)
    return jnp.reshape(out2, (N, C, D, H, W))


def cbam3d_reference(x, params):
    """Pure-JAX reference mirroring the PyTorch CBAM3D forward (eval-mode BN)."""
    hi = jax.lax.Precision.HIGHEST
    w1, b1, w2, b2 = params["w1"], params["b1"], params["w2"], params["b2"]
    w_sp = params["w_sp"]
    N, C = x.shape[:2]
    g = jnp.mean(jnp.mean(x, axis=(3, 4), keepdims=True), axis=2, keepdims=True)
    gv = g.reshape(N, C)
    h = jax.nn.relu(jnp.matmul(gv, w1.T, precision=hi) + b1)
    att = jnp.matmul(h, w2.T, precision=hi) + b2
    xc = x * att[:, :, None, None, None]
    pmax = jnp.max(xc, axis=1, keepdims=True)
    pmean = jnp.mean(xc, axis=1, keepdims=True)
    s = jnp.concatenate([pmax, pmean], axis=1)
    pad = (w_sp.shape[-1] - 1) // 2
    conv = jax.lax.conv_general_dilated(
        s, w_sp, window_strides=(1, 1, 1), padding=[(pad, pad)] * 3,
        dimension_numbers=("NCDHW", "OIDHW", "NCDHW"), precision=hi)
    sp = conv * params["bn_scale"] + params["bn_shift"]
    return xc * sp


# -----------------------------------------------------------------------------
# HFF3D forward: resize + fuse_conv1 -> resize -> CBAM3D (Pallas) -> fuse_conv2
# -----------------------------------------------------------------------------
def _fold_bn(gamma, beta, mean, var, eps=1e-5):
    scale = gamma / jnp.sqrt(var + eps)
    return scale, beta - mean * scale


def _conv_bn_relu(x, w, b, bn_scale, bn_shift):
    """Conv3d(k=3, stride=1, pad=1, bias=True) + BatchNorm3d(eval) + ReLU (XLA)."""
    pad = (w.shape[-1] - 1) // 2
    y = jax.lax.conv_general_dilated(
        x, w, window_strides=(1, 1, 1), padding=[(pad, pad)] * 3,
        dimension_numbers=("NCDHW", "OIDHW", "NCDHW"),
        precision=jax.lax.Precision.HIGHEST)
    y = y + b[None, :, None, None, None]
    y = y * bn_scale[None, :, None, None, None] + bn_shift[None, :, None, None, None]
    return jax.nn.relu(y)


def _resize_trilinear(x, size):
    """Matches F.interpolate(mode='trilinear', align_corners=False)."""
    N, C = x.shape[:2]
    return jax.image.resize(x, (N, C) + tuple(size), method="trilinear",
                            antialias=False)


def hff3d_forward(inputs, params, *, use_pallas_attention=True, return_att=False):
    hi3, hi6, x_in = inputs
    hi3_4 = _resize_trilinear(hi3, (4, 4, 4))
    hi6_4 = _resize_trilinear(hi6, (4, 4, 4))
    hi_3 = _conv_bn_relu(jnp.concatenate([hi3_4, hi6_4], axis=1),
                         params["fc1_w"], params["fc1_b"],
                         params["fc1_bn_scale"], params["fc1_bn_shift"])
    hi_3 = _resize_trilinear(hi_3, (8, 8, 8))
    if use_pallas_attention:
        hi_3_att = cbam3d_pallas(hi_3, params["att"])
    else:
        hi_3_att = cbam3d_reference(hi_3, params["att"])
    x_out = _conv_bn_relu(jnp.concatenate([hi_3_att, x_in], axis=1),
                          params["fc2_w"], params["fc2_b"],
                          params["fc2_bn_scale"], params["fc2_bn_shift"])
    # HFF3D(..., res=0): no residual add
    if return_att:
        return x_out, hi_3_att
    return x_out


if __name__ == "__main__":
    # HFF3D(channels=[8, 16, 16]): fuse_conv1 (24->16) at 4^3, CBAM3D(16, rate=4)
    # on the hard-coded 8^3 grid, fuse_conv2 (32->16) at 8^3.  res=0.
    N = 2
    c0, c1, c2 = 8, 16, 16
    rate = 4
    Cr = c2 // rate
    eps = 1e-5

    key = jax.random.PRNGKey(0)
    ks = jax.random.split(key, 18)

    def nrm(k, shape, scale=1.0):
        return scale * jax.random.normal(k, shape, jnp.float32)

    # CBAM3D (self.att) params; BN of the spatial branch folded (mean=0, var=1).
    att_params = {
        "w1": nrm(ks[0], (Cr, c2)) / np.sqrt(c2),
        "b1": nrm(ks[1], (Cr,), 0.1),
        "w2": nrm(ks[2], (c2, Cr)) / np.sqrt(Cr),
        "b2": nrm(ks[3], (c2,), 0.1),
        "w_sp": nrm(ks[4], (1, 2, 7, 7, 7), 0.05),
    }
    gamma_sp = 1.0 + nrm(ks[5], (), 0.1)
    beta_sp = nrm(ks[6], (), 0.1)
    att_params["bn_scale"] = gamma_sp / jnp.sqrt(1.0 + eps)
    att_params["bn_shift"] = beta_sp

    # fuse_conv1 / fuse_conv2 (Conv3d k=3 pad=1 bias=True + BN(eval) + ReLU)
    params = {
        "att": att_params,
        "fc1_w": nrm(ks[7], (c2, c0 + c1, 3, 3, 3)) / np.sqrt((c0 + c1) * 27),
        "fc1_b": nrm(ks[8], (c2,), 0.1),
        "fc2_w": nrm(ks[9], (c2, 2 * c2, 3, 3, 3)) / np.sqrt(2 * c2 * 27),
        "fc2_b": nrm(ks[10], (c2,), 0.1),
    }
    params["fc1_bn_scale"], params["fc1_bn_shift"] = _fold_bn(
        1.0 + nrm(ks[11], (c2,), 0.1), nrm(ks[12], (c2,), 0.1),
        jnp.zeros((c2,), jnp.float32), jnp.ones((c2,), jnp.float32), eps)
    params["fc2_bn_scale"], params["fc2_bn_shift"] = _fold_bn(
        1.0 + nrm(ks[13], (c2,), 0.1), nrm(ks[14], (c2,), 0.1),
        jnp.zeros((c2,), jnp.float32), jnp.ones((c2,), jnp.float32), eps)

    # HFF3D inputs: x = [hi3, hi6, x_in]
    hi3 = nrm(ks[15], (N, c0, 8, 8, 8))
    hi6 = nrm(ks[16], (N, c1, 4, 4, 4))
    x_in = nrm(ks[17], (N, c2, 8, 8, 8))

    out, att_pl = hff3d_forward((hi3, hi6, x_in), params,
                                use_pallas_attention=True, return_att=True)
    out = jax.block_until_ready(out)

    ref, att_ref = hff3d_forward((hi3, hi6, x_in), params,
                                 use_pallas_attention=False, return_att=True)

    if not bool(jnp.allclose(att_pl, att_ref, atol=1e-3, rtol=1e-2)):
        max_err = float(jnp.max(jnp.abs(att_pl - att_ref)))
        raise AssertionError(f"Pallas CBAM3D mismatch vs reference, max abs err = {max_err}")
    if not bool(jnp.allclose(out, ref, atol=3e-3, rtol=3e-2)):
        max_err = float(jnp.max(jnp.abs(out - ref)))
        raise AssertionError(f"HFF3D output mismatch vs reference, max abs err = {max_err}")

    print("KERNEL_OK")
</pallas_src>

<mosaic_0001>
module attributes {stable_mosaic.version = 11 : i64} {
  func.func @_cbam3d_kernel(%arg0: i32, %arg1: memref<1x16x512xf32, #tpu.memory_space<vmem>>, %arg2: memref<16x4xf32, #tpu.memory_space<vmem>>, %arg3: memref<1x4xf32, #tpu.memory_space<vmem>>, %arg4: memref<4x16xf32, #tpu.memory_space<vmem>>, %arg5: memref<1x16xf32, #tpu.memory_space<vmem>>, %arg6: memref<1024x512xf32, #tpu.memory_space<vmem>>, %arg7: memref<1x2xf32, #tpu.memory_space<smem>>, %arg8: memref<1x16x512xf32, #tpu.memory_space<vmem>>) attributes {dimension_semantics = [#tpu.dimension_semantics<parallel>], iteration_bounds = array<i64: 2>, scalar_prefetch = 0 : i64, scratch_operands = 0 : i64, tpu.core_type = #tpu.core_type<tc>, window_params = [{transform_indices = @transform_0, window_bounds = array<i64: 1, 16, 512>}, {pipeline_mode = #tpu.pipeline_mode<synchronous>, transform_indices = @transform_1, window_bounds = array<i64: 16, 4>}, {pipeline_mode = #tpu.pipeline_mode<synchronous>, transform_indices = @transform_2, window_bounds = array<i64: 1, 4>}, {pipeline_mode = #tpu.pipeline_mode<synchronous>, transform_indices = @transform_3, window_bounds = array<i64: 4, 16>}, {pipeline_mode = #tpu.pipeline_mode<synchronous>, transform_indices = @transform_4, window_bounds = array<i64: 1, 16>}, {pipeline_mode = #tpu.pipeline_mode<synchronous>, transform_indices = @transform_5, window_bounds = array<i64: 1024, 512>}, {transform_indices = @transform_6, window_bounds = array<i64: 1, 2>}, {transform_indices = @transform_7, window_bounds = array<i64: 1, 16, 512>}]} {
    %c0 = arith.constant 0 : index
    %c0_0 = arith.constant 0 : index
    %c0_1 = arith.constant 0 : index
    %0 = vector.load %arg1[%c0, %c0_0, %c0_1] : memref<1x16x512xf32, #tpu.memory_space<vmem>>, vector<1x16x512xf32>
    %cst = arith.constant dense<0.000000e+00> : vector<1x16xf32>
    %1 = vector.multi_reduction <add>, %0, %cst [2] : vector<1x16x512xf32> to vector<1x16xf32>
    %cst_2 = arith.constant 5.120000e+02 : f32
    %2 = vector.broadcast %cst_2 : f32 to vector<1x16xf32>
    %3 = arith.divf %1, %2 : vector<1x16xf32>
    %c0_3 = arith.constant 0 : index
    %c0_4 = arith.constant 0 : index
    %4 = vector.load %arg2[%c0_3, %c0_4] : memref<16x4xf32, #tpu.memory_space<vmem>>, vector<16x4xf32>
    %cst_5 = arith.constant dense<0.000000e+00> : vector<1x4xf32>
    %5 = tpu.matmul %3, %4, %cst_5 {dimension_numbers = #tpu.dot_dimension_numbers<[1], [0], [0], [1], [0, 0, 1, 1], [], []>} : vector<1x16xf32>, vector<16x4xf32>, vector<1x4xf32> -> vector<1x4xf32>
    %c0_6 = arith.constant 0 : index
    %c0_7 = arith.constant 0 : index
    %6 = vector.load %arg3[%c0_6, %c0_7] : memref<1x4xf32, #tpu.memory_space<vmem>>, vector<1x4xf32>
    %7 = arith.addf %5, %6 : vector<1x4xf32>
    %cst_8 = arith.constant 0.000000e+00 : f32
    %8 = vector.broadcast %cst_8 : f32 to vector<1x4xf32>
    %9 = arith.maximumf %7, %8 : vector<1x4xf32>
    %c0_9 = arith.constant 0 : index
    %c0_10 = arith.constant 0 : index
    %10 = vector.load %arg4[%c0_9, %c0_10] : memref<4x16xf32, #tpu.memory_space<vmem>>, vector<4x16xf32>
    %cst_11 = arith.constant dense<0.000000e+00> : vector<1x16xf32>
    %11 = tpu.matmul %9, %10, %cst_11 {dimension_numbers = #tpu.dot_dimension_numbers<[1], [0], [0], [1], [0, 0, 1, 1], [], []>} : vector<1x4xf32>, vector<4x16xf32>, vector<1x16xf32> -> vector<1x16xf32>
    %c0_12 = arith.constant 0 : index
    %c0_13 = arith.constant 0 : index
    %12 = vector.load %arg5[%c0_12, %c0_13] : memref<1x16xf32, #tpu.memory_space<vmem>>, vector<1x16xf32>
    %13 = arith.addf %11, %12 : vector<1x16xf32>
    %14 = vector.shape_cast %13 : vector<1x16xf32> to vector<1x16x1xf32>
    %15 = vector.broadcast %14 : vector<1x16x1xf32> to vector<1x16x512xf32>
    %16 = arith.mulf %0, %15 : vector<1x16x512xf32>
    %cst_14 = arith.constant dense<0xFF800000> : vector<1x512xf32>
    %17 = vector.multi_reduction <maximumf>, %16, %cst_14 [1] : vector<1x16x512xf32> to vector<1x512xf32>
    %cst_15 = arith.constant dense<0.000000e+00> : vector<1x512xf32>
    %18 = vector.multi_reduction <add>, %16, %cst_15 [1] : vector<1x16x512xf32> to vector<1x512xf32>
    %cst_16 = arith.constant 1.600000e+01 : f32
    %19 = vector.broadcast %cst_16 : f32 to vector<1x512xf32>
    %20 = arith.divf %18, %19 : vector<1x512xf32>
    %21 = tpu.concatenate %17, %20 in 1 : vector<1x512xf32>, vector<1x512xf32> -> vector<1x1024xf32>
    %c0_17 = arith.constant 0 : index
    %c0_18 = arith.constant 0 : index
    %22 = vector.load %arg6[%c0_17, %c0_18] : memref<1024x512xf32, #tpu.memory_space<vmem>>, vector<1024x512xf32>
    %cst_19 = arith.constant dense<0.000000e+00> : vector<1x512xf32>
    %23 = tpu.matmul %21, %22, %cst_19 {dimension_numbers = #tpu.dot_dimension_numbers<[1], [0], [0], [1], [0, 0, 1, 1], [], []>} : vector<1x1024xf32>, vector<1024x512xf32>, vector<1x512xf32> -> vector<1x512xf32>
    %c0_20 = arith.constant 0 : index
    %c0_21 = arith.constant 0 : index
    %24 = memref.load %arg7[%c0_20, %c0_21] : memref<1x2xf32, #tpu.memory_space<smem>>
    %25 = vector.broadcast %24 : f32 to vector<1x512xf32>
    %26 = arith.mulf %23, %25 : vector<1x512xf32>
    %c0_22 = arith.constant 0 : index
    %c1 = arith.constant 1 : index
    %27 = memref.load %arg7[%c0_22, %c1] : memref<1x2xf32, #tpu.memory_space<smem>>
    %28 = vector.broadcast %27 : f32 to vector<1x512xf32>
    %29 = arith.addf %26, %28 : vector<1x512xf32>
    %30 = vector.shape_cast %29 : vector<1x512xf32> to vector<1x1x512xf32>
    %31 = vector.broadcast %30 : vector<1x1x512xf32> to vector<1x16x512xf32>
    %32 = arith.mulf %16, %31 : vector<1x16x512xf32>
    %c0_23 = arith.constant 0 : index
    %c0_24 = arith.constant 0 : index
    %c0_25 = arith.constant 0 : index
    %33 = vector.load %arg8[%c0_23, %c0_24, %c0_25] : memref<1x16x512xf32, #tpu.memory_space<vmem>>, vector<1x16x512xf32>
    tpu.vector_store %arg8[%c0_23, %c0_24, %c0_25], %32 {strides = array<i32>} : memref<1x16x512xf32, #tpu.memory_space<vmem>>, vector<1x16x512xf32>,
    return
  }
  func.func @transform_0(%arg0: i32) -> (i32, i32, i32) {
    %c0_i32 = arith.constant 0 : i32
    %c0_i32_0 = arith.constant 0 : i32
    %c0_i32_1 = arith.constant 0 : i32
    return %arg0, %c0_i32, %c0_i32_0 : i32, i32, i32
  }
  func.func @transform_1(%arg0: i32) -> (i32, i32) {
    %c0_i32 = arith.constant 0 : i32
    %c0_i32_0 = arith.constant 0 : i32
    %c0_i32_1 = arith.constant 0 : i32
    return %c0_i32, %c0_i32_0 : i32, i32
  }
  func.func @transform_2(%arg0: i32) -> (i32, i32) {
    %c0_i32 = arith.constant 0 : i32
    %c0_i32_0 = arith.constant 0 : i32
    %c0_i32_1 = arith.constant 0 : i32
    return %c0_i32, %c0_i32_0 : i32, i32
  }
  func.func @transform_3(%arg0: i32) -> (i32, i32) {
    %c0_i32 = arith.constant 0 : i32
    %c0_i32_0 = arith.constant 0 : i32
    %c0_i32_1 = arith.constant 0 : i32
    return %c0_i32, %c0_i32_0 : i32, i32
  }
  func.func @transform_4(%arg0: i32) -> (i32, i32) {
    %c0_i32 = arith.constant 0 : i32
    %c0_i32_0 = arith.constant 0 : i32
    %c0_i32_1 = arith.constant 0 : i32
    return %c0_i32, %c0_i32_0 : i32, i32
  }
  func.func @transform_5(%arg0: i32) -> (i32, i32) {
    %c0_i32 = arith.constant 0 : i32
    %c0_i32_0 = arith.constant 0 : i32
    %c0_i32_1 = arith.constant 0 : i32
    return %c0_i32, %c0_i32_0 : i32, i32
  }
  func.func @transform_6(%arg0: i32) -> (i32, i32) {
    %c0_i32 = arith.constant 0 : i32
    %c0_i32_0 = arith.constant 0 : i32
    %c0_i32_1 = arith.constant 0 : i32
    return %c0_i32, %c0_i32_0 : i32, i32
  }
  func.func @transform_7(%arg0: i32) -> (i32, i32, i32) {
    %c0_i32 = arith.constant 0 : i32
    %c0_i32_0 = arith.constant 0 : i32
    %c0_i32_1 = arith.constant 0 : i32
    return %arg0, %c0_i32, %c0_i32_0 : i32, i32, i32
  }
}

</mosaic_0001>

<llo_original>
// kernel: tpu_custom_call.1
$region0: #{tpu_custom_call.1}
  #allocation0 [shape = 'u32[]', space=smem, size = 0x4, offset = 0x4, fixed_abs, tag = 'smem constant byte address 0x4 - core index']
  #allocation1 [shape = 'u32[144,128]{1,0:T(1,128)}', space=vmem, size = 0x12000, scoped, tag = 'internal scratch']
  %s0 = inlined_call_operand.hbm [shape: f32[2,16,512], index: 0, kind: input, shape index: {}]
  %s1 = inlined_call_operand.vmem [shape: f32[16,4], index: 1, kind: input, shape index: {}]
  %s2 = inlined_call_operand.hbm [shape: f32[1,4], index: 2, kind: input, shape index: {}]
  %s3 = inlined_call_operand.hbm [shape: f32[4,16], index: 3, kind: input, shape index: {}]
  %s4 = inlined_call_operand.hbm [shape: f32[1,16], index: 4, kind: input, shape index: {}]
  %s5 = inlined_call_operand.hbm [shape: f32[1024,512], index: 5, kind: input, shape index: {}]
  %s6 = inlined_call_operand.hbm [shape: f32[1,2], index: 6, kind: input, shape index: {}]
  %s7 = inlined_call_operand.hbm [shape: f32[2,16,512], index: 7, kind: output, shape index: {}]
  %s8 = sld [smem:[#allocation0]]
  $region85: #{tpu_custom_call.1} parent=0
    _
  %s10 = ssub.s32 1, %s8
  %s11 = scalar_select 0, %s10, %s8
  $region1: #{tpu_custom_call.1} parent=0
    #allocation2 [shape = 'u8[65536]{0}', space=vmem, size = 0x10000, scoped, tag = 'input window, operand 0']
    #allocation3 [shape = 's32[2]{0}', space=sflag, size = 0x8, scoped, tag = 'scoped memory for tpu_custom_call.1']
    #allocation4 [shape = 's32[2]{0}', space=sflag, size = 0x8, scoped, tag = 'scoped memory for tpu_custom_call.1']
    #allocation5 [shape = 's32[2]{0}', space=sflag, size = 0x8, scoped, tag = 'scoped memory for tpu_custom_call.1']
    #allocation6 [shape = 'u8[512]{0}', space=vmem, size = 0x400, scoped, tag = 'input window, operand 2, single buffered']
    #allocation7 [shape = 's32[1]{0}', space=sflag, size = 0x4, scoped, tag = 'scoped memory for tpu_custom_call.1']
    #allocation8 [shape = 'u8[2048]{0}', space=vmem, size = 0x800, scoped, tag = 'input window, operand 3, single buffered']
    #allocation9 [shape = 'u8[512]{0}', space=vmem, size = 0x400, scoped, tag = 'input window, operand 4, single buffered']
    #allocation10 [shape = 's32[1]{0}', space=sflag, size = 0x4, scoped, tag = 'scoped memory for tpu_custom_call.1']
    #allocation11 [shape = 'u8[2097152]{0}', space=vmem, size = 0x200000, scoped, tag = 'input window, operand 5, single buffered']
    #allocation12 [shape = 'u8[512]{0}', space=smem, size = 0x200, scoped, tag = 'input window, operand 6, single buffered']
    #allocation13 [shape = 'u8[65536]{0}', space=vmem, size = 0x10000, scoped, tag = 'output window, operand 0']
    %12 = vsyncpa [#allocation3], 0
    %s13 = scalar_lea.sflag [#allocation3], 1
    %14 = vsyncpa %s13, 0
    %15 = vsyncpa [#allocation7], 0
    %16 = vsyncpa [#allocation10], 0
    %17 = vsyncpa [#allocation5], 0
    %18 = vsyncpa [#allocation4], 0
    %s19 = scalar_lea.sflag [#allocation4], 1
    %20 = vsyncpa %s19, 0
    loop: start=0, step=1, limit=4
    $region2: #{tpu_custom_call.1} parent=1 // loop_pre_header
      _
    $region3: #{tpu_custom_call.1} parent=1 // loop_header
      %s22 = sphi 0, %s26
      %p23 = scmp.ge.s32.totalorder %s22, 4
      %s32 = sphi 0, %s34
      %s35 = sphi 0, %s32
      %s36 = sphi 0, %s35
      %s52 = sphi 0, %s36
      %s56 = sphi 0, %s56
      %s58 = sphi 0, %s56
      %s59 = sphi 0, %s58
      %s73 = sphi 0, %s59
      %s77 = sphi 0, %s77
      %s79 = sphi 0, %s77
      %s80 = sphi 0, %s79
      %s94 = sphi 0, %s80
      %s98 = sphi 0, %s98
      %s100 = sphi 0, %s98
      %s101 = sphi 0, %s100
      %s115 = sphi 0, %s101
      %s119 = sphi 0, %s119
      %s121 = sphi 0, %s119
      %s122 = sphi 0, %s121
      %s136 = sphi 0, %s122
      %s140 = sphi 0, %s140
      %s142 = sphi 0, %s140
      %s143 = sphi 0, %s142
      %s157 = sphi 0, %s143
      %s161 = sphi 0, %s161
      %s163 = sphi 0, %s161
      %s164 = sphi 0, %s163
      %s178 = sphi 0, %s164
      %s184 = sphi 0, %s186
      %s187 = sphi 0, %s184
      %s188 = sphi 0, %s187
      %s204 = sphi 0, %s188
    $region4: #{tpu_custom_call.1} parent=1 // loop_header_branch
      %25 = sbr.rel (%p23) target = $region8
    $region5: #{tpu_custom_call.1} parent=1 // loop_body
      %s27 = ssub.s32 %s22, 1
      %s28 = ssub.s32 %s22, 2
      %s29 = sadd.s32 %s22, 1
      %s30 = ssub.s32 %s22, %s29
      %p31 = scmp.eq.s32.totalorder %s30, 0
      %s33 = sadd.s32 %s32, 1
      %s34 = scalar_select %p31, %s32, %s33
      %p37 = pneg %p31
      %p38 = scmp.eq.s32.totalorder %s22, 1
      %p39 = por %p37, %p38
      %p40 = scmp.ne.s32.totalorder %s32, %s35
      %p41 = scmp.eq.s32.totalorder %s22, 0
      %p42 = por %p40, %p41
      %p43 = scmp.ne.s32.totalorder %s32, %s35
      %p44 = scmp.eq.s32.totalorder %s27, 1
      %p45 = por %p43, %p44
      %p46 = scmp.ne.s32.totalorder %s35, %s36
      %p47 = scmp.eq.s32.totalorder %s27, 0
      %p48 = por %p46, %p47
      %p49 = scmp.ne.s32.totalorder %s35, %s36
      %p50 = scmp.eq.s32.totalorder %s28, 1
      %p51 = por %p49, %p50
      %p53 = scmp.ne.s32.totalorder %s36, %s52
      %p54 = scmp.eq.s32.totalorder %s28, 0
      %p55 = por %p53, %p54
      %s57 = sadd.s32 %s56, 1
      %p60 = scmp.eq.s32.totalorder %s22, 1
      %p61 = scmp.ne.s32.totalorder %s56, %s58
      %p62 = scmp.eq.s32.totalorder %s22, 0
      %p63 = por %p61, %p62
      %p64 = scmp.ne.s32.totalorder %s56, %s58
      %p65 = scmp.eq.s32.totalorder %s27, 1
      %p66 = por %p64, %p65
      %p67 = scmp.ne.s32.totalorder %s58, %s59
      %p68 = scmp.eq.s32.totalorder %s27, 0
      %p69 = por %p67, %p68
      %p70 = scmp.ne.s32.totalorder %s58, %s59
      %p71 = scmp.eq.s32.totalorder %s28, 1
      %p72 = por %p70, %p71
      %p74 = scmp.ne.s32.totalorder %s59, %s73
      %p75 = scmp.eq.s32.totalorder %s28, 0
      %p76 = por %p74, %p75
      %s78 = sadd.s32 %s77, 1
      %p81 = scmp.eq.s32.totalorder %s22, 1
      %p82 = scmp.ne.s32.totalorder %s77, %s79
      %p83 = scmp.eq.s32.totalorder %s22, 0
      %p84 = por %p82, %p83
      %p85 = scmp.ne.s32.totalorder %s77, %s79
      %p86 = scmp.eq.s32.totalorder %s27, 1
      %p87 = por %p85, %p86
      %p88 = scmp.ne.s32.totalorder %s79, %s80
      %p89 = scmp.eq.s32.totalorder %s27, 0
      %p90 = por %p88, %p89
      %p91 = scmp.ne.s32.totalorder %s79, %s80
      %p92 = scmp.eq.s32.totalorder %s28, 1
      %p93 = por %p91, %p92
      %p95 = scmp.ne.s32.totalorder %s80, %s94
      %p96 = scmp.eq.s32.totalorder %s28, 0
      %p97 = por %p95, %p96
      %s99 = sadd.s32 %s98, 1
      %p102 = scmp.eq.s32.totalorder %s22, 1
      %p103 = scmp.ne.s32.totalorder %s98, %s100
      %p104 = scmp.eq.s32.totalorder %s22, 0
      %p105 = por %p103, %p104
      %p106 = scmp.ne.s32.totalorder %s98, %s100
      %p107 = scmp.eq.s32.totalorder %s27, 1
      %p108 = por %p106, %p107
      %p109 = scmp.ne.s32.totalorder %s100, %s101
      %p110 = scmp.eq.s32.totalorder %s27, 0
      %p111 = por %p109, %p110
      %p112 = scmp.ne.s32.totalorder %s100, %s101
      %p113 = scmp.eq.s32.totalorder %s28, 1
      %p114 = por %p112, %p113
      %p116 = scmp.ne.s32.totalorder %s101, %s115
      %p117 = scmp.eq.s32.totalorder %s28, 0
      %p118 = por %p116, %p117
      %s120 = sadd.s32 %s119, 1
      %p123 = scmp.eq.s32.totalorder %s22, 1
      %p124 = scmp.ne.s32.totalorder %s119, %s121
      %p125 = scmp.eq.s32.totalorder %s22, 0
      %p126 = por %p124, %p125
      %p127 = scmp.ne.s32.totalorder %s119, %s121
      %p128 = scmp.eq.s32.totalorder %s27, 1
      %p129 = por %p127, %p128
      %p130 = scmp.ne.s32.totalorder %s121, %s122
      %p131 = scmp.eq.s32.totalorder %s27, 0
      %p132 = por %p130, %p131
      %p133 = scmp.ne.s32.totalorder %s121, %s122
      %p134 = scmp.eq.s32.totalorder %s28, 1
      %p135 = por %p133, %p134
      %p137 = scmp.ne.s32.totalorder %s122, %s136
      %p138 = scmp.eq.s32.totalorder %s28, 0
      %p139 = por %p137, %p138
      %s141 = sadd.s32 %s140, 1
      %p144 = scmp.eq.s32.totalorder %s22, 1
      %p145 = scmp.ne.s32.totalorder %s140, %s142
      %p146 = scmp.eq.s32.totalorder %s22, 0
      %p147 = por %p145, %p146
      %p148 = scmp.ne.s32.totalorder %s140, %s142
      %p149 = scmp.eq.s32.totalorder %s27, 1
      %p150 = por %p148, %p149
      %p151 = scmp.ne.s32.totalorder %s142, %s143
      %p152 = scmp.eq.s32.totalorder %s27, 0
      %p153 = por %p151, %p152
      %p154 = scmp.ne.s32.totalorder %s142, %s143
      %p155 = scmp.eq.s32.totalorder %s28, 1
      %p156 = por %p154, %p155
      %p158 = scmp.ne.s32.totalorder %s143, %s157
      %p159 = scmp.eq.s32.totalorder %s28, 0
      %p160 = por %p158, %p159
      %s162 = sadd.s32 %s161, 1
      %p165 = scmp.eq.s32.totalorder %s22, 1
      %p166 = scmp.ne.s32.totalorder %s161, %s163
      %p167 = scmp.eq.s32.totalorder %s22, 0
      %p168 = por %p166, %p167
      %p169 = scmp.ne.s32.totalorder %s161, %s163
      %p170 = scmp.eq.s32.totalorder %s27, 1
      %p171 = por %p169, %p170
      %p172 = scmp.ne.s32.totalorder %s163, %s164
      %p173 = scmp.eq.s32.totalorder %s27, 0
      %p174 = por %p172, %p173
      %p175 = scmp.ne.s32.totalorder %s163, %s164
      %p176 = scmp.eq.s32.totalorder %s28, 1
      %p177 = por %p175, %p176
      %p179 = scmp.ne.s32.totalorder %s164, %s178
      %p180 = scmp.eq.s32.totalorder %s28, 0
      %p181 = por %p179, %p180
      %s182 = ssub.s32 %s22, %s29
      %p183 = scmp.eq.s32.totalorder %s182, 0
      %s185 = sadd.s32 %s184, 1
      %s186 = scalar_select %p183, %s184, %s185
      %p189 = pneg %p183
      %p190 = scmp.eq.s32.totalorder %s22, 1
      %p191 = por %p189, %p190
      %p192 = scmp.ne.s32.totalorder %s184, %s187
      %p193 = scmp.eq.s32.totalorder %s22, 0
      %p194 = por %p192, %p193
      %p195 = scmp.ne.s32.totalorder %s184, %s187
      %p196 = scmp.eq.s32.totalorder %s27, 1
      %p197 = por %p195, %p196
      %p198 = scmp.ne.s32.totalorder %s187, %s188
      %p199 = scmp.eq.s32.totalorder %s27, 0
      %p200 = por %p198, %p199
      %p201 = scmp.ne.s32.totalorder %s187, %s188
      %p202 = scmp.eq.s32.totalorder %s28, 1
      %p203 = por %p201, %p202
      %p205 = scmp.ne.s32.totalorder %s188, %s204
      %p206 = scmp.eq.s32.totalorder %s28, 0
      %p207 = por %p205, %p206
      %p208 = scmp.le.s32.totalorder 1, %s22
      %p209 = scmp.lt.s32.totalorder %s22, 3
      %p210 = pnand %p208, %p209
      %p211 = pneg %p210
      // Predicated region
      $region9: #{tpu_custom_call.1} parent=5 // pred_check
        _
      $region10: #{tpu_custom_call.1} parent=5 // pred_check_branch
        %213 = sbr.rel (%p210) target = $region12
      $region11: #{tpu_custom_call.1} parent=5 // pred_region
        %s214 = ssub.s32 %s22, 1
        // Predicated region
        $region13: #{tpu_custom_call.1} parent=11 // pred_check
          %p215 = pneg %p69
        $region14: #{tpu_custom_call.1} parent=11 // pred_check_branch
          %217 = sbr.rel (%p215) target = $region16
        $region15: #{tpu_custom_call.1} parent=11 // pred_region
          _
        $region16: #{tpu_custom_call.1} parent=11 // pred_fallthru
          _
        // Predicated region
        $region17: #{tpu_custom_call.1} parent=11 // pred_check
          %p218 = pneg %p90
        $region18: #{tpu_custom_call.1} parent=11 // pred_check_branch
          %220 = sbr.rel (%p218) target = $region20
        $region19: #{tpu_custom_call.1} parent=11 // pred_region
          %s222 = ssub.s32 16, 16
          %223 = vsyncadd [#allocation7], %s222
          %s225 = sshll.u32 [#allocation6], 4
          %s226 = int_to_ptr.vmem [resolvable:$true] %s225
          %228 = dma.hbm_to_vmem [thread:$0]  %s2, 16, %s226, [#allocation7]
        $region20: #{tpu_custom_call.1} parent=11 // pred_fallthru
          _
        // Predicated region
        $region21: #{tpu_custom_call.1} parent=11 // pred_check
          %p229 = pneg %p111
        $region22: #{tpu_custom_call.1} parent=11 // pred_check_branch
          %231 = sbr.rel (%p229) target = $region24
        $region23: #{tpu_custom_call.1} parent=11 // pred_region
          %s233 = ssub.s32 64, 64
          %234 = vsyncadd [#allocation7], %s233
          %s236 = sshll.u32 [#allocation8], 4
          %s237 = int_to_ptr.vmem [resolvable:$true] %s236
          %239 = dma.hbm_to_vmem [thread:$0]  %s3, 64, %s237, [#allocation7]
        $region24: #{tpu_custom_call.1} parent=11 // pred_fallthru
          _
        // Predicated region
        $region25: #{tpu_custom_call.1} parent=11 // pred_check
          %p240 = pneg %p132
        $region26: #{tpu_custom_call.1} parent=11 // pred_check_branch
          %242 = sbr.rel (%p240) target = $region28
        $region27: #{tpu_custom_call.1} parent=11 // pred_region
          %s244 = ssub.s32 16, 16
          %245 = vsyncadd [#allocation10], %s244
          %s247 = sshll.u32 [#allocation9], 4
          %s248 = int_to_ptr.vmem [resolvable:$true] %s247
          %250 = dma.hbm_to_vmem [thread:$0]  %s4, 16, %s248, [#allocation10]
        $region28: #{tpu_custom_call.1} parent=11 // pred_fallthru
          _
        // Predicated region
        $region29: #{tpu_custom_call.1} parent=11 // pred_check
          %p251 = pneg %p153
        $region30: #{tpu_custom_call.1} parent=11 // pred_check_branch
          %253 = sbr.rel (%p251) target = $region32
        $region31: #{tpu_custom_call.1} parent=11 // pred_region
          %s255 = ssub.s32 65536, 65536
          %256 = vsyncadd [#allocation10], %s255
          %s257 = sshll.u32 [#allocation11], 4
          %s258 = int_to_ptr.vmem [resolvable:$true] %s257
          %263 = dma.hbm_to_vmem [thread:$0]  %s5, 65536, %s258, [#allocation10], 512, 512, 32
        $region32: #{tpu_custom_call.1} parent=11 // pred_fallthru
          _
        // Predicated region
        $region33: #{tpu_custom_call.1} parent=11 // pred_check
          %p264 = pneg %p174
        $region34: #{tpu_custom_call.1} parent=11 // pred_check_branch
          %266 = sbr.rel (%p264) target = $region36
        $region35: #{tpu_custom_call.1} parent=11 // pred_region
          %s268 = ssub.s32 16, 16
          %269 = vsyncadd [#allocation5], %s268
          %272 = dma.hbm_to_smem %s6, 16, [#allocation12], [#allocation5]
        $region36: #{tpu_custom_call.1} parent=11 // pred_fallthru
          _
      $region12: #{tpu_custom_call.1} parent=5 // pred_fallthru
        _
      %p273 = scmp.lt.s32.totalorder %s22, 2
      // Predicated region
      $region37: #{tpu_custom_call.1} parent=5 // pred_check
        %p274 = pneg %p273
      $region38: #{tpu_custom_call.1} parent=5 // pred_check_branch
        %276 = sbr.rel (%p274) target = $region40
      $region39: #{tpu_custom_call.1} parent=5 // pred_region
        // Predicated region
        $region41: #{tpu_custom_call.1} parent=39 // pred_check
          %p277 = pneg %p42
        $region42: #{tpu_custom_call.1} parent=39 // pred_check_branch
          %279 = sbr.rel (%p277) target = $region44
        $region43: #{tpu_custom_call.1} parent=39 // pred_region
          %s280 = sand.u32 %s32, 1
          %s281 = scalar_lea.sflag [#allocation3], %s280
          %s282 = sand.u32 %s32, 1
          %s283 = smul.addr %s282, 64
          %s284 = scalar_lea.vmem [#allocation2], %s283
          %s286 = ssub.s32 1024, 1024
          %287 = vsyncadd %s281, %s286
          %s288 = smul.addr %s22, 8
          %s289 = smul.addr %s288, 128
          %s290 = scalar_lea.hbm %s0, %s289
          %s291 = sshll.u32 %s284, 4
          %s292 = int_to_ptr.vmem [resolvable:$true] %s291
          %297 = dma.hbm_to_vmem [thread:$0]  %s290, 1024, %s292, %s281, 512, 512, 32
        $region44: #{tpu_custom_call.1} parent=39 // pred_fallthru
          _
      $region40: #{tpu_custom_call.1} parent=5 // pred_fallthru
        _
      %p298 = scmp.le.s32.totalorder 1, %s22
      %p299 = scmp.lt.s32.totalorder %s22, 3
      %p300 = pnand %p298, %p299
      %p301 = pneg %p300
      // Predicated region
      $region45: #{tpu_custom_call.1} parent=5 // pred_check
        _
      $region46: #{tpu_custom_call.1} parent=5 // pred_check_branch
        %303 = sbr.rel (%p300) target = $region48
      $region47: #{tpu_custom_call.1} parent=5 // pred_region
        %s304 = ssub.s32 %s22, 1
        %s305 = sand.u32 %s35, 1
        %s306 = scalar_lea.sflag [#allocation3], %s305
        %s307 = sand.u32 %s35, 1
        %s308 = smul.addr %s307, 64
        %s309 = scalar_lea.vmem [#allocation2], %s308
        // Predicated region
        $region49: #{tpu_custom_call.1} parent=47 // pred_check
          %p310 = pneg %p48
        $region50: #{tpu_custom_call.1} parent=47 // pred_check_branch
          %312 = sbr.rel (%p310) target = $region52
        $region51: #{tpu_custom_call.1} parent=47 // pred_region
          %313 = dma.done %s306, 1024
        $region52: #{tpu_custom_call.1} parent=47 // pred_fallthru
          _
        // Predicated region
        $region53: #{tpu_custom_call.1} parent=47 // pred_check
          %p314 = pneg %p90
        $region54: #{tpu_custom_call.1} parent=47 // pred_check_branch
          %316 = sbr.rel (%p314) target = $region56
        $region55: #{tpu_custom_call.1} parent=47 // pred_region
          %317 = dma.done [#allocation7], 16
        $region56: #{tpu_custom_call.1} parent=47 // pred_fallthru
          _
        // Predicated region
        $region57: #{tpu_custom_call.1} parent=47 // pred_check
          %p318 = pneg %p111
        $region58: #{tpu_custom_call.1} parent=47 // pred_check_branch
          %320 = sbr.rel (%p318) target = $region60
        $region59: #{tpu_custom_call.1} parent=47 // pred_region
          %321 = dma.done [#allocation7], 64
        $region60: #{tpu_custom_call.1} parent=47 // pred_fallthru
          _
        // Predicated region
        $region61: #{tpu_custom_call.1} parent=47 // pred_check
          %p322 = pneg %p132
        $region62: #{tpu_custom_call.1} parent=47 // pred_check_branch
          %324 = sbr.rel (%p322) target = $region64
        $region63: #{tpu_custom_call.1} parent=47 // pred_region
          %325 = dma.done [#allocation10], 16
        $region64: #{tpu_custom_call.1} parent=47 // pred_fallthru
          _
        // Predicated region
        $region65: #{tpu_custom_call.1} parent=47 // pred_check
          %p326 = pneg %p153
        $region66: #{tpu_custom_call.1} parent=47 // pred_check_branch
          %328 = sbr.rel (%p326) target = $region68
        $region67: #{tpu_custom_call.1} parent=47 // pred_region
          %329 = dma.done [#allocation10], 65536
        $region68: #{tpu_custom_call.1} parent=47 // pred_fallthru
          _
        // Predicated region
        $region69: #{tpu_custom_call.1} parent=47 // pred_check
          %p330 = pneg %p174
        $region70: #{tpu_custom_call.1} parent=47 // pred_check_branch
          %332 = sbr.rel (%p330) target = $region72
        $region71: #{tpu_custom_call.1} parent=47 // pred_region
          %333 = dma.done [#allocation5], 16
        $region72: #{tpu_custom_call.1} parent=47 // pred_fallthru
          _
        %334 = sfence
        %s335 = sand.u32 %s35, 1
        %s336 = scalar_lea.sflag [#allocation3], %s335
        %s337 = sand.u32 %s35, 1
        %s338 = smul.addr %s337, 64
        %s339 = scalar_lea.vmem [#allocation2], %s338
        %p340 = pneg %p48
        %p341 = pneg %p45
        %p342 = pneg %p69
        %p343 = pneg %p66
        %p344 = pneg %p90
        %p345 = pneg %p87
        %p346 = pneg %p111
        %p347 = pneg %p108
        %p348 = pneg %p132
        %p349 = pneg %p129
        %p350 = pneg %p153
        %p351 = pneg %p150
        %p352 = pneg %p174
        %p353 = pneg %p171
        %p354 = pneg %p200
        %p355 = pneg %p197
        %s356 = sand.u32 %s187, 1
        %s357 = scalar_lea.sflag [#allocation4], %s356
        %s358 = sand.u32 %s187, 1
        %s359 = smul.addr %s358, 64
        %s360 = scalar_lea.vmem [#allocation13], %s359
        %v361 = vld [vmem:[%s309] sm:$0xff]
        %v362 = vld [vmem:[%s309 + $0x8] sm:$0xff]
        %v363 = vld [vmem:[%s309 + $0x10] sm:$0xff]
        %v364 = vld [vmem:[%s309 + $0x18] sm:$0xff]
        %v365 = vld [vmem:[%s309 + $0x20] sm:$0xff]
        %v366 = vld [vmem:[%s309 + $0x28] sm:$0xff]
        %v367 = vld [vmem:[%s309 + $0x30] sm:$0xff]
        %v368 = vld [vmem:[%s309 + $0x38] sm:$0xff]
        %v369 = vadd.f32 %v361, %v362
        %v370 = vadd.f32 %v369, %v363
        %v371 = vadd.f32 %v370, %v364
        %372 = vadd.xlane.f32.xlu0 %v371
        %v373 = vpop.xlane.xlu0 %372
        %v374 = vadd.f32 %v365, %v366
        %v375 = vadd.f32 %v374, %v367
        %v376 = vadd.f32 %v375, %v368
        %377 = vadd.xlane.f32.xlu0 %v376
        %v378 = vpop.xlane.xlu0 %377
        %v379 = vrcp.pop 512.0
        %v380 = vmul.f32 %v373, %v379
        %v381 = vmul.f32 %v378, %v379
        %v382 = vld [vmem:[%s1] sm:$0xff]
        %v383 = vld [vmem:[%s1 + $0x8] sm:$0xff]
        %v384 = vld [vmem:[#allocation6] sm:$0x1]
        %v387 = vlaneseq
        %v388 = vand.u32 %v387, 127
        %v389 = vlaneseq
        %v390 = vshrl.u32 %v389, 7
        %v391 = vsub.s32 %v388, %v390
        %v392 = vrot.slane %v380, %v391
        %v393 = vadd.s32 %v388, 4294967288
        %v394 = vlaneseq
        %v395 = vshrl.u32 %v394, 7
        %v396 = vsub.s32 %v393, %v395
        %v397 = vrot.slane %v381, %v396
        %vm398 = vcmask 130112
        %v399 = vsel %vm398, %v397, %v392
        %vm400 = vcmask 130048
        %v401 = vsel %vm400, %v399, 0
        %403 = vmatprep.subr.mxu0 0.0
        %404 = vmatpush1.msra.mxu0 %v382
        %405 = vmatprep.subr.mxu0 0.0
        %406 = vmatpush1.msra.mxu0 %v383
        %407 = vmatprep.subr.mxu0 0.0
        %408 = vmatpush1.msra.mxu0 0.0
        %409 = vmatprep.subr.mxu0 0.0
        %410 = vmatpush1.msra.mxu0 0.0
        %411 = vmatprep.subr.mxu0 0.0
        %412 = vmatpush1.msra.mxu0 0.0
        %413 = vmatprep.subr.mxu0 0.0
        %414 = vmatpush1.msra.mxu0 0.0
        %415 = vmatprep.subr.mxu0 0.0
        %416 = vmatpush1.msra.mxu0 0.0
        %417 = vmatprep.subr.mxu0 0.0
        %418 = vmatpush1.msra.mxu0 0.0
        %419 = vmatprep.subr.mxu0 0.0
        %420 = vmatpush1.msra.mxu0 0.0
        %421 = vmatprep.subr.mxu0 0.0
        %422 = vmatpush1.msra.mxu0 0.0
        %423 = vmatprep.subr.mxu0 0.0
        %424 = vmatpush1.msra.mxu0 0.0
        %425 = vmatprep.subr.mxu0 0.0
        %426 = vmatpush1.msra.mxu0 0.0
        %427 = vmatprep.subr.mxu0 0.0
        %428 = vmatpush1.msra.mxu0 0.0
        %429 = vmatprep.subr.mxu0 0.0
        %430 = vmatpush1.msra.mxu0 0.0
        %431 = vmatprep.subr.mxu0 0.0
        %432 = vmatpush1.msra.mxu0 0.0
        %433 = vmatprep.subr.mxu0 0.0
        %434 = vmatpush1.msra.mxu0 0.0
        %435 = vmatprep.subr.mxu0 0.0
        %436 = vmatpush1.msra.mxu0 0.0
        %437 = vmatprep.subr.mxu0 0.0
        %438 = vmatpush1.msra.mxu0 0.0
        %439 = vmatprep.subr.mxu0 0.0
        %440 = vmatpush1.msra.mxu0 0.0
        %441 = vmatprep.subr.mxu0 0.0
        %442 = vmatpush1.msra.mxu0 0.0
        %443 = vmatprep.subr.mxu0 0.0
        %444 = vmatpush1.msra.mxu0 0.0
        %445 = vmatprep.subr.mxu0 0.0
        %446 = vmatpush1.msra.mxu0 0.0
        %447 = vmatprep.subr.mxu0 0.0
        %448 = vmatpush1.msra.mxu0 0.0
        %449 = vmatprep.subr.mxu0 0.0
        %450 = vmatpush1.msra.mxu0 0.0
        %451 = vmatprep.subr.mxu0 0.0
        %452 = vmatpush1.msra.mxu0 0.0
        %453 = vmatprep.subr.mxu0 0.0
        %454 = vmatpush1.msra.mxu0 0.0
        %455 = vmatprep.subr.mxu0 0.0
        %456 = vmatpush1.msra.mxu0 0.0
        %457 = vmatprep.subr.mxu0 0.0
        %458 = vmatpush1.msra.mxu0 0.0
        %459 = vmatprep.subr.mxu0 0.0
        %460 = vmatpush1.msra.mxu0 0.0
        %461 = vmatprep.subr.mxu0 0.0
        %462 = vmatpush1.msra.mxu0 0.0
        %463 = vmatprep.subr.mxu0 0.0
        %464 = vmatpush1.msra.mxu0 0.0
        %465 = vmatprep.subr.mxu0 0.0
        %466 = vmatpush1.msra.mxu0 0.0
        %467 = vmatprep.mubr.f32.mxu0 0.0
        %468 = vmatmul.mubr.f32.gmra.mrb[0].mxu0 %v401
        %v469 = vpop.f32.mrb[0].mxu0
        %v470 = vadd.f32 %v384, %v469
        %v471 = vpop.f32.mrb[0].mxu0
        %472 = vdwg.mxu0
        %v473 = vmax.f32 %v470, 0.0
        %v474 = vld [vmem:[#allocation8] sm:$0xf]
        %v475 = vld [vmem:[#allocation9] sm:$0x1]
        %vm476 = vcmask 31744
        %v478 = vsel %vm476, %v473, 0
        %vm480 = vcmask 1043456
        %v482 = vsel %vm480, %v474, 0
        %484 = vmatprep.subr.mxu0 0.0
        %485 = vmatpush1.msra.mxu0 %v482
        %486 = vmatprep.subr.mxu0 0.0
        %487 = vmatpush1.msra.mxu0 0.0
        %488 = vmatprep.subr.mxu0 0.0
        %489 = vmatpush1.msra.mxu0 0.0
        %490 = vmatprep.subr.mxu0 0.0
        %491 = vmatpush1.msra.mxu0 0.0
        %492 = vmatprep.subr.mxu0 0.0
        %493 = vmatpush1.msra.mxu0 0.0
        %494 = vmatprep.subr.mxu0 0.0
        %495 = vmatpush1.msra.mxu0 0.0
        %496 = vmatprep.subr.mxu0 0.0
        %497 = vmatpush1.msra.mxu0 0.0
        %498 = vmatprep.subr.mxu0 0.0
        %499 = vmatpush1.msra.mxu0 0.0
        %500 = vmatprep.subr.mxu0 0.0
        %501 = vmatpush1.msra.mxu0 0.0
        %502 = vmatprep.subr.mxu0 0.0
        %503 = vmatpush1.msra.mxu0 0.0
        %504 = vmatprep.subr.mxu0 0.0
        %505 = vmatpush1.msra.mxu0 0.0
        %506 = vmatprep.subr.mxu0 0.0
        %507 = vmatpush1.msra.mxu0 0.0
        %508 = vmatprep.subr.mxu0 0.0
        %509 = vmatpush1.msra.mxu0 0.0
        %510 = vmatprep.subr.mxu0 0.0
        %511 = vmatpush1.msra.mxu0 0.0
        %512 = vmatprep.subr.mxu0 0.0
        %513 = vmatpush1.msra.mxu0 0.0
        %514 = vmatprep.subr.mxu0 0.0
        %515 = vmatpush1.msra.mxu0 0.0
        %516 = vmatprep.subr.mxu0 0.0
        %517 = vmatpush1.msra.mxu0 0.0
        %518 = vmatprep.subr.mxu0 0.0
        %519 = vmatpush1.msra.mxu0 0.0
        %520 = vmatprep.subr.mxu0 0.0
        %521 = vmatpush1.msra.mxu0 0.0
        %522 = vmatprep.subr.mxu0 0.0
        %523 = vmatpush1.msra.mxu0 0.0
        %524 = vmatprep.subr.mxu0 0.0
        %525 = vmatpush1.msra.mxu0 0.0
        %526 = vmatprep.subr.mxu0 0.0
        %527 = vmatpush1.msra.mxu0 0.0
        %528 = vmatprep.subr.mxu0 0.0
        %529 = vmatpush1.msra.mxu0 0.0
        %530 = vmatprep.subr.mxu0 0.0
        %531 = vmatpush1.msra.mxu0 0.0
        %532 = vmatprep.subr.mxu0 0.0
        %533 = vmatpush1.msra.mxu0 0.0
        %534 = vmatprep.subr.mxu0 0.0
        %535 = vmatpush1.msra.mxu0 0.0
        %536 = vmatprep.subr.mxu0 0.0
        %537 = vmatpush1.msra.mxu0 0.0
        %538 = vmatprep.subr.mxu0 0.0
        %539 = vmatpush1.msra.mxu0 0.0
        %540 = vmatprep.subr.mxu0 0.0
        %541 = vmatpush1.msra.mxu0 0.0
        %542 = vmatprep.subr.mxu0 0.0
        %543 = vmatpush1.msra.mxu0 0.0
        %544 = vmatprep.subr.mxu0 0.0
        %545 = vmatpush1.msra.mxu0 0.0
        %546 = vmatprep.subr.mxu0 0.0
        %547 = vmatpush1.msra.mxu0 0.0
        %548 = vmatprep.mubr.f32.mxu0 0.0
        %549 = vmatmul.mubr.f32.gmra.mrb[0].mxu0 %v478
        %v550 = vpop.f32.mrb[0].mxu0
        %v551 = vadd.f32 %v475, %v550
        %v552 = vpop.f32.mrb[0].mxu0
        %553 = vdwg.mxu0
        %v554 = vlaneseq
        %v555 = vshrl.u32 %v554, 7
        %v556 = vsub.s32 0, %v555
        %v557 = vrot.slane %v551, %v556
        %559 = vbcast.lane.b32.xlu0 %v557, 256
        %v560 = vpop.permute.xlu0 %559
        %s562 = sor.u32 256, 8
        %563 = vbcast.lane.b32.xlu0 %v557, %s562
        %v564 = vpop.permute.xlu0 %563
        %v565 = vmul.f32 %v361, %v560
        %v566 = vmul.f32 %v362, %v560
        %v567 = vmul.f32 %v363, %v560
        %v568 = vmul.f32 %v364, %v560
        %v569 = vmul.f32 %v365, %v564
        %v570 = vmul.f32 %v366, %v564
        %v571 = vmul.f32 %v367, %v564
        %v572 = vmul.f32 %v368, %v564
        %v573 = vmax.f32 %v565, %v569
        %v574 = vrot.slane %v573, 4
        %v575 = vmax.f32 %v573, %v574
        %v576 = vrot.slane %v575, 2
        %v577 = vmax.f32 %v575, %v576
        %v578 = vrot.slane %v577, 1
        %v579 = vmax.f32 %v577, %v578
        %v580 = vmax.f32 %v566, %v570
        %v581 = vrot.slane %v580, 4
        %v582 = vmax.f32 %v580, %v581
        %v583 = vrot.slane %v582, 2
        %v584 = vmax.f32 %v582, %v583
        %v585 = vrot.slane %v584, 1
        %v586 = vmax.f32 %v584, %v585
        %v587 = vmax.f32 %v567, %v571
        %v588 = vrot.slane %v587, 4
        %v589 = vmax.f32 %v587, %v588
        %v590 = vrot.slane %v589, 2
        %v591 = vmax.f32 %v589, %v590
        %v592 = vrot.slane %v591, 1
        %v593 = vmax.f32 %v591, %v592
        %v594 = vmax.f32 %v568, %v572
        %v595 = vrot.slane %v594, 4
        %v596 = vmax.f32 %v594, %v595
        %v597 = vrot.slane %v596, 2
        %v598 = vmax.f32 %v596, %v597
        %v599 = vrot.slane %v598, 1
        %v600 = vmax.f32 %v598, %v599
        %v601 = vadd.f32 %v565, %v569
        %v602 = vrot.slane %v601, 4
        %v603 = vadd.f32 %v601, %v602
        %v604 = vrot.slane %v603, 2
        %v605 = vadd.f32 %v603, %v604
        %v606 = vrot.slane %v605, 1
        %v607 = vadd.f32 %v605, %v606
        %v608 = vadd.f32 %v566, %v570
        %v609 = vrot.slane %v608, 4
        %v610 = vadd.f32 %v608, %v609
        %v611 = vrot.slane %v610, 2
        %v612 = vadd.f32 %v610, %v611
        %v613 = vrot.slane %v612, 1
        %v614 = vadd.f32 %v612, %v613
        %v615 = vadd.f32 %v567, %v571
        %v616 = vrot.slane %v615, 4
        %v617 = vadd.f32 %v615, %v616
        %v618 = vrot.slane %v617, 2
        %v619 = vadd.f32 %v617, %v618
        %v620 = vrot.slane %v619, 1
        %v621 = vadd.f32 %v619, %v620
        %v622 = vadd.f32 %v568, %v572
        %v623 = vrot.slane %v622, 4
        %v624 = vadd.f32 %v622, %v623
        %v625 = vrot.slane %v624, 2
        %v626 = vadd.f32 %v624, %v625
        %v627 = vrot.slane %v626, 1
        %v628 = vadd.f32 %v626, %v627
        %v629 = vrcp.pop 16.0
        %v630 = vmul.f32 %v607, %v629
        %v631 = vmul.f32 %v614, %v629
        %v632 = vmul.f32 %v621, %v629
        %v633 = vmul.f32 %v628, %v629
        %v634 = vld [vmem:[#allocation11] sm:$0xff]
        %v635 = vld [vmem:[#allocation11 + $0x8] sm:$0xff]
        %v636 = vld [vmem:[#allocation11 + $0x10] sm:$0xff]
        %v637 = vld [vmem:[#allocation11 + $0x18] sm:$0xff]
        %v638 = vld [vmem:[#allocation11 + $0x20] sm:$0xff]
        %v639 = vld [vmem:[#allocation11 + $0x28] sm:$0xff]
        %v640 = vld [vmem:[#allocation11 + $0x30] sm:$0xff]
        %v641 = vld [vmem:[#allocation11 + $0x38] sm:$0xff]
        %v642 = vld [vmem:[#allocation11 + $0x40] sm:$0xff]
        %v643 = vld [vmem:[#allocation11 + $0x48] sm:$0xff]
        %v644 = vld [vmem:[#allocation11 + $0x50] sm:$0xff]
        %v645 = vld [vmem:[#allocation11 + $0x58] sm:$0xff]
        %v646 = vld [vmem:[#allocation11 + $0x60] sm:$0xff]
        %v647 = vld [vmem:[#allocation11 + $0x68] sm:$0xff]
        %v648 = vld [vmem:[#allocation11 + $0x70] sm:$0xff]
        %v649 = vld [vmem:[#allocation11 + $0x78] sm:$0xff]
        %v650 = vld [vmem:[#allocation11 + $0x80] sm:$0xff]
        %v651 = vld [vmem:[#allocation11 + $0x88] sm:$0xff]
        %v652 = vld [vmem:[#allocation11 + $0x90] sm:$0xff]
        %v653 = vld [vmem:[#allocation11 + $0x98] sm:$0xff]
        %v654 = vld [vmem:[#allocation11 + $0xa0] sm:$0xff]
        %v655 = vld [vmem:[#allocation11 + $0xa8] sm:$0xff]
        %v656 = vld [vmem:[#allocation11 + $0xb0] sm:$0xff]
        %v657 = vld [vmem:[#allocation11 + $0xb8] sm:$0xff]
        %v658 = vld [vmem:[#allocation11 + $0xc0] sm:$0xff]
        %v659 = vld [vmem:[#allocation11 + $0xc8] sm:$0xff]
        %v660 = vld [vmem:[#allocation11 + $0xd0] sm:$0xff]
        %v661 = vld [vmem:[#allocation11 + $0xd8] sm:$0xff]
        %v662 = vld [vmem:[#allocation11 + $0xe0] sm:$0xff]
        %v663 = vld [vmem:[#allocation11 + $0xe8] sm:$0xff]
        %v664 = vld [vmem:[#allocation11 + $0xf0] sm:$0xff]
        %v665 = vld [vmem:[#allocation11 + $0xf8] sm:$0xff]
        %v666 = vld [vmem:[#allocation11 + $0x100] sm:$0xff]
        %v667 = vld [vmem:[#allocation11 + $0x108] sm:$0xff]
        %v668 = vld [vmem:[#allocation11 + $0x110] sm:$0xff]
        %v669 = vld [vmem:[#allocation11 + $0x118] sm:$0xff]
        %v670 = vld [vmem:[#allocation11 + $0x120] sm:$0xff]
        %v671 = vld [vmem:[#allocation11 + $0x128] sm:$0xff]
        %v672 = vld [vmem:[#allocation11 + $0x130] sm:$0xff]
        %v673 = vld [vmem:[#allocation11 + $0x138] sm:$0xff]
        %v674 = vld [vmem:[#allocation11 + $0x140] sm:$0xff]
        %v675 = vld [vmem:[#allocation11 + $0x148] sm:$0xff]
        %v676 = vld [vmem:[#allocation11 + $0x150] sm:$0xff]
        %v677 = vld [vmem:[#allocation11 + $0x158] sm:$0xff]
        %v678 = vld [vmem:[#allocation11 + $0x160] sm:$0xff]
        %v679 = vld [vmem:[#allocation11 + $0x168] sm:$0xff]
        %v680 = vld [vmem:[#allocation11 + $0x170] sm:$0xff]
        %v681 = vld [vmem:[#allocation11 + $0x178] sm:$0xff]
        %v682 = vld [vmem:[#allocation11 + $0x180] sm:$0xff]
        %v683 = vld [vmem:[#allocation11 + $0x188] sm:$0xff]
        %v684 = vld [vmem:[#allocation11 + $0x190] sm:$0xff]
        %v685 = vld [vmem:[#allocation11 + $0x198] sm:$0xff]
        %v686 = vld [vmem:[#allocation11 + $0x1a0] sm:$0xff]
        %v687 = vld [vmem:[#allocation11 + $0x1a8] sm:$0xff]
        %v688 = vld [vmem:[#allocation11 + $0x1b0] sm:$0xff]
        %v689 = vld [vmem:[#allocation11 + $0x1b8] sm:$0xff]
        %v690 = vld [vmem:[#allocation11 + $0x1c0] sm:$0xff]
        %v691 = vld [vmem:[#allocation11 + $0x1c8] sm:$0xff]
        %v692 = vld [vmem:[#allocation11 + $0x1d0] sm:$0xff]
        %v693 = vld [vmem:[#allocation11 + $0x1d8] sm:$0xff]
        %v694 = vld [vmem:[#allocation11 + $0x1e0] sm:$0xff]
        %v695 = vld [vmem:[#allocation11 + $0x1e8] sm:$0xff]
        %v696 = vld [vmem:[#allocation11 + $0x1f0] sm:$0xff]
        %v697 = vld [vmem:[#allocation11 + $0x1f8] sm:$0xff]
        %v698 = vld [vmem:[#allocation11 + $0x200] sm:$0xff]
        %v699 = vld [vmem:[#allocation11 + $0x208] sm:$0xff]
        %v700 = vld [vmem:[#allocation11 + $0x210] sm:$0xff]
        %v701 = vld [vmem:[#allocation11 + $0x218] sm:$0xff]
        %v702 = vld [vmem:[#allocation11 + $0x220] sm:$0xff]
        %v703 = vld [vmem:[#allocation11 + $0x228] sm:$0xff]
        %v704 = vld [vmem:[#allocation11 + $0x230] sm:$0xff]
        %v705 = vld [vmem:[#allocation11 + $0x238] sm:$0xff]
        %v706 = vld [vmem:[#allocation11 + $0x240] sm:$0xff]
        %v707 = vld [vmem:[#allocation11 + $0x248] sm:$0xff]
        %v708 = vld [vmem:[#allocation11 + $0x250] sm:$0xff]
        %v709 = vld [vmem:[#allocation11 + $0x258] sm:$0xff]
        %v710 = vld [vmem:[#allocation11 + $0x260] sm:$0xff]
        %v711 = vld [vmem:[#allocation11 + $0x268] sm:$0xff]
        %v712 = vld [vmem:[#allocation11 + $0x270] sm:$0xff]
        %v713 = vld [vmem:[#allocation11 + $0x278] sm:$0xff]
        %v714 = vld [vmem:[#allocation11 + $0x280] sm:$0xff]
        %v715 = vld [vmem:[#allocation11 + $0x288] sm:$0xff]
        %v716 = vld [vmem:[#allocation11 + $0x290] sm:$0xff]
        %v717 = vld [vmem:[#allocation11 + $0x298] sm:$0xff]
        %v718 = vld [vmem:[#allocation11 + $0x2a0] sm:$0xff]
        %v719 = vld [vmem:[#allocation11 + $0x2a8] sm:$0xff]
        %v720 = vld [vmem:[#allocation11 + $0x2b0] sm:$0xff]
        %v721 = vld [vmem:[#allocation11 + $0x2b8] sm:$0xff]
        %v722 = vld [vmem:[#allocation11 + $0x2c0] sm:$0xff]
        %v723 = vld [vmem:[#allocation11 + $0x2c8] sm:$0xff]
        %v724 = vld [vmem:[#allocation11 + $0x2d0] sm:$0xff]
        %v725 = vld [vmem:[#allocation11 + $0x2d8] sm:$0xff]
        %v726 = vld [vmem:[#allocation11 + $0x2e0] sm:$0xff]
        %v727 = vld [vmem:[#allocation11 + $0x2e8] sm:$0xff]
        %v728 = vld [vmem:[#allocation11 + $0x2f0] sm:$0xff]
        %v729 = vld [vmem:[#allocation11 + $0x2f8] sm:$0xff]
        %v730 = vld [vmem:[#allocation11 + $0x300] sm:$0xff]
        %v731 = vld [vmem:[#allocation11 + $0x308] sm:$0xff]
        %v732 = vld [vmem:[#allocation11 + $0x310] sm:$0xff]
        %v733 = vld [vmem:[#allocation11 + $0x318] sm:$0xff]
        %v734 = vld [vmem:[#allocation11 + $0x320] sm:$0xff]
        %v735 = vld [vmem:[#allocation11 + $0x328] sm:$0xff]
        %v736 = vld [vmem:[#allocation11 + $0x330] sm:$0xff]
        %v737 = vld [vmem:[#allocation11 + $0x338] sm:$0xff]
        %v738 = vld [vmem:[#allocation11 + $0x340] sm:$0xff]
        %v739 = vld [vmem:[#allocation11 + $0x348] sm:$0xff]
        %v740 = vld [vmem:[#allocation11 + $0x350] sm:$0xff]
        %v741 = vld [vmem:[#allocation11 + $0x358] sm:$0xff]
        %v742 = vld [vmem:[#allocation11 + $0x360] sm:$0xff]
        %v743 = vld [vmem:[#allocation11 + $0x368] sm:$0xff]
        %v744 = vld [vmem:[#allocation11 + $0x370] sm:$0xff]
        %v745 = vld [vmem:[#allocation11 + $0x378] sm:$0xff]
        %v746 = vld [vmem:[#allocation11 + $0x380] sm:$0xff]
        %v747 = vld [vmem:[#allocation11 + $0x388] sm:$0xff]
        %v748 = vld [vmem:[#allocation11 + $0x390] sm:$0xff]
        %v749 = vld [vmem:[#allocation11 + $0x398] sm:$0xff]
        %v750 = vld [vmem:[#allocation11 + $0x3a0] sm:$0xff]
        %v751 = vld [vmem:[#allocation11 + $0x3a8] sm:$0xff]
        %v752 = vld [vmem:[#allocation11 + $0x3b0] sm:$0xff]
        %v753 = vld [vmem:[#allocation11 + $0x3b8] sm:$0xff]
        %v754 = vld [vmem:[#allocation11 + $0x3c0] sm:$0xff]
        %v755 = vld [vmem:[#allocation11 + $0x3c8] sm:$0xff]
        %v756 = vld [vmem:[#allocation11 + $0x3d0] sm:$0xff]
        %v757 = vld [vmem:[#allocation11 + $0x3d8] sm:$0xff]
        %v758 = vld [vmem:[#allocation11 + $0x3e0] sm:$0xff]
        %v759 = vld [vmem:[#allocation11 + $0x3e8] sm:$0xff]
        %v760 = vld [vmem:[#allocation11 + $0x3f0] sm:$0xff]
        %v761 = vld [vmem:[#allocation11 + $0x3f8] sm:$0xff]
        %v762 = vld [vmem:[#allocation11 + $0x400] sm:$0xff]
        %v763 = vld [vmem:[#allocation11 + $0x408] sm:$0xff]
        %v764 = vld [vmem:[#allocation11 + $0x410] sm:$0xff]
        %v765 = vld [vmem:[#allocation11 + $0x418] sm:$0xff]
        %v766 = vld [vmem:[#allocation11 + $0x420] sm:$0xff]
        %v767 = vld [vmem:[#allocation11 + $0x428] sm:$0xff]
        %v768 = vld [vmem:[#allocation11 + $0x430] sm:$0xff]
        %v769 = vld [vmem:[#allocation11 + $0x438] sm:$0xff]
        %v770 = vld [vmem:[#allocation11 + $0x440] sm:$0xff]
        %v771 = vld [vmem:[#allocation11 + $0x448] sm:$0xff]
        %v772 = vld [vmem:[#allocation11 + $0x450] sm:$0xff]
        %v773 = vld [vmem:[#allocation11 + $0x458] sm:$0xff]
        %v774 = vld [vmem:[#allocation11 + $0x460] sm:$0xff]
        %v775 = vld [vmem:[#allocation11 + $0x468] sm:$0xff]
        %v776 = vld [vmem:[#allocation11 + $0x470] sm:$0xff]
        %v777 = vld [vmem:[#allocation11 + $0x478] sm:$0xff]
        %v778 = vld [vmem:[#allocation11 + $0x480] sm:$0xff]
        %v779 = vld [vmem:[#allocation11 + $0x488] sm:$0xff]
        %v780 = vld [vmem:[#allocation11 + $0x490] sm:$0xff]
        %v781 = vld [vmem:[#allocation11 + $0x498] sm:$0xff]
        %v782 = vld [vmem:[#allocation11 + $0x4a0] sm:$0xff]
        %v783 = vld [vmem:[#allocation11 + $0x4a8] sm:$0xff]
        %v784 = vld [vmem:[#allocation11 + $0x4b0] sm:$0xff]
        %v785 = vld [vmem:[#allocation11 + $0x4b8] sm:$0xff]
        %v786 = vld [vmem:[#allocation11 + $0x4c0] sm:$0xff]
        %v787 = vld [vmem:[#allocation11 + $0x4c8] sm:$0xff]
        %v788 = vld [vmem:[#allocation11 + $0x4d0] sm:$0xff]
        %v789 = vld [vmem:[#allocation11 + $0x4d8] sm:$0xff]
        %v790 = vld [vmem:[#allocation11 + $0x4e0] sm:$0xff]
        %v791 = vld [vmem:[#allocation11 + $0x4e8] sm:$0xff]
        %v792 = vld [vmem:[#allocation11 + $0x4f0] sm:$0xff]
        %v793 = vld [vmem:[#allocation11 + $0x4f8] sm:$0xff]
        %v794 = vld [vmem:[#allocation11 + $0x500] sm:$0xff]
        %v795 = vld [vmem:[#allocation11 + $0x508] sm:$0xff]
        %v796 = vld [vmem:[#allocation11 + $0x510] sm:$0xff]
        %v797 = vld [vmem:[#allocation11 + $0x518] sm:$0xff]
        %v798 = vld [vmem:[#allocation11 + $0x520] sm:$0xff]
        %v799 = vld [vmem:[#allocation11 + $0x528] sm:$0xff]
        %v800 = vld [vmem:[#allocation11 + $0x530] sm:$0xff]
        %v801 = vld [vmem:[#allocation11 + $0x538] sm:$0xff]
        %v802 = vld [vmem:[#allocation11 + $0x540] sm:$0xff]
        %v803 = vld [vmem:[#allocation11 + $0x548] sm:$0xff]
        %v804 = vld [vmem:[#allocation11 + $0x550] sm:$0xff]
        %v805 = vld [vmem:[#allocation11 + $0x558] sm:$0xff]
        %v806 = vld [vmem:[#allocation11 + $0x560] sm:$0xff]
        %v807 = vld [vmem:[#allocation11 + $0x568] sm:$0xff]
        %v808 = vld [vmem:[#allocation11 + $0x570] sm:$0xff]
        %v809 = vld [vmem:[#allocation11 + $0x578] sm:$0xff]
        %v810 = vld [vmem:[#allocation11 + $0x580] sm:$0xff]
        %v811 = vld [vmem:[#allocation11 + $0x588] sm:$0xff]
        %v812 = vld [vmem:[#allocation11 + $0x590] sm:$0xff]
        %v813 = vld [vmem:[#allocation11 + $0x598] sm:$0xff]
        %v814 = vld [vmem:[#allocation11 + $0x5a0] sm:$0xff]
        %v815 = vld [vmem:[#allocation11 + $0x5a8] sm:$0xff]
        %v816 = vld [vmem:[#allocation11 + $0x5b0] sm:$0xff]
        %v817 = vld [vmem:[#allocation11 + $0x5b8] sm:$0xff]
        %v818 = vld [vmem:[#allocation11 + $0x5c0] sm:$0xff]
        %v819 = vld [vmem:[#allocation11 + $0x5c8] sm:$0xff]
        %v820 = vld [vmem:[#allocation11 + $0x5d0] sm:$0xff]
        %v821 = vld [vmem:[#allocation11 + $0x5d8] sm:$0xff]
        %v822 = vld [vmem:[#allocation11 + $0x5e0] sm:$0xff]
        %v823 = vld [vmem:[#allocation11 + $0x5e8] sm:$0xff]
        %v824 = vld [vmem:[#allocation11 + $0x5f0] sm:$0xff]
        %v825 = vld [vmem:[#allocation11 + $0x5f8] sm:$0xff]
        %v826 = vld [vmem:[#allocation11 + $0x600] sm:$0xff]
        %v827 = vld [vmem:[#allocation11 + $0x608] sm:$0xff]
        %v828 = vld [vmem:[#allocation11 + $0x610] sm:$0xff]
        %v829 = vld [vmem:[#allocation11 + $0x618] sm:$0xff]
        %v830 = vld [vmem:[#allocation11 + $0x620] sm:$0xff]
        %v831 = vld [vmem:[#allocation11 + $0x628] sm:$0xff]
        %v832 = vld [vmem:[#allocation11 + $0x630] sm:$0xff]
        %v833 = vld [vmem:[#allocation11 + $0x638] sm:$0xff]
        %v834 = vld [vmem:[#allocation11 + $0x640] sm:$0xff]
        %v835 = vld [vmem:[#allocation11 + $0x648] sm:$0xff]
        %v836 = vld [vmem:[#allocation11 + $0x650] sm:$0xff]
        %v837 = vld [vmem:[#allocation11 + $0x658] sm:$0xff]
        %v838 = vld [vmem:[#allocation11 + $0x660] sm:$0xff]
        %v839 = vld [vmem:[#allocation11 + $0x668] sm:$0xff]
        %v840 = vld [vmem:[#allocation11 + $0x670] sm:$0xff]
        %v841 = vld [vmem:[#allocation11 + $0x678] sm:$0xff]
        %v842 = vld [vmem:[#allocation11 + $0x680] sm:$0xff]
        %v843 = vld [vmem:[#allocation11 + $0x688] sm:$0xff]
        %v844 = vld [vmem:[#allocation11 + $0x690] sm:$0xff]
        %v845 = vld [vmem:[#allocation11 + $0x698] sm:$0xff]
        %v846 = vld [vmem:[#allocation11 + $0x6a0] sm:$0xff]
        %v847 = vld [vmem:[#allocation11 + $0x6a8] sm:$0xff]
        %v848 = vld [vmem:[#allocation11 + $0x6b0] sm:$0xff]
        %v849 = vld [vmem:[#allocation11 + $0x6b8] sm:$0xff]
        %v850 = vld [vmem:[#allocation11 + $0x6c0] sm:$0xff]
        %v851 = vld [vmem:[#allocation11 + $0x6c8] sm:$0xff]
        %v852 = vld [vmem:[#allocation11 + $0x6d0] sm:$0xff]
        %v853 = vld [vmem:[#allocation11 + $0x6d8] sm:$0xff]
        %v854 = vld [vmem:[#allocation11 + $0x6e0] sm:$0xff]
        %v855 = vld [vmem:[#allocation11 + $0x6e8] sm:$0xff]
        %v856 = vld [vmem:[#allocation11 + $0x6f0] sm:$0xff]
        %v857 = vld [vmem:[#allocation11 + $0x6f8] sm:$0xff]
        %v858 = vld [vmem:[#allocation11 + $0x700] sm:$0xff]
        %v859 = vld [vmem:[#allocation11 + $0x708] sm:$0xff]
        %v860 = vld [vmem:[#allocation11 + $0x710] sm:$0xff]
        %v861 = vld [vmem:[#allocation11 + $0x718] sm:$0xff]
        %v862 = vld [vmem:[#allocation11 + $0x720] sm:$0xff]
        %v863 = vld [vmem:[#allocation11 + $0x728] sm:$0xff]
        %v864 = vld [vmem:[#allocation11 + $0x730] sm:$0xff]
        %v865 = vld [vmem:[#allocation11 + $0x738] sm:$0xff]
        %v866 = vld [vmem:[#allocation11 + $0x740] sm:$0xff]
        %v867 = vld [vmem:[#allocation11 + $0x748] sm:$0xff]
        %v868 = vld [vmem:[#allocation11 + $0x750] sm:$0xff]
        %v869 = vld [vmem:[#allocation11 + $0x758] sm:$0xff]
        %v870 = vld [vmem:[#allocation11 + $0x760] sm:$0xff]
        %v871 = vld [vmem:[#allocation11 + $0x768] sm:$0xff]
        %v872 = vld [vmem:[#allocation11 + $0x770] sm:$0xff]
        %v873 = vld [vmem:[#allocation11 + $0x778] sm:$0xff]
        %v874 = vld [vmem:[#allocation11 + $0x780] sm:$0xff]
        %v875 = vld [vmem:[#allocation11 + $0x788] sm:$0xff]
        %v876 = vld [vmem:[#allocation11 + $0x790] sm:$0xff]
        %v877 = vld [vmem:[#allocation11 + $0x798] sm:$0xff]
        %v878 = vld [vmem:[#allocation11 + $0x7a0] sm:$0xff]
        %v879 = vld [vmem:[#allocation11 + $0x7a8] sm:$0xff]
        %v880 = vld [vmem:[#allocation11 + $0x7b0] sm:$0xff]
        %v881 = vld [vmem:[#allocation11 + $0x7b8] sm:$0xff]
        %v882 = vld [vmem:[#allocation11 + $0x7c0] sm:$0xff]
        %v883 = vld [vmem:[#allocation11 + $0x7c8] sm:$0xff]
        %v884 = vld [vmem:[#allocation11 + $0x7d0] sm:$0xff]
        %v885 = vld [vmem:[#allocation11 + $0x7d8] sm:$0xff]
        %v886 = vld [vmem:[#allocation11 + $0x7e0] sm:$0xff]
        %v887 = vld [vmem:[#allocation11 + $0x7e8] sm:$0xff]
        %v888 = vld [vmem:[#allocation11 + $0x7f0] sm:$0xff]
        %v889 = vld [vmem:[#allocation11 + $0x7f8] sm:$0xff]
        %v890 = vld [vmem:[#allocation11 + $0x800] sm:$0xff]
        %v891 = vld [vmem:[#allocation11 + $0x808] sm:$0xff]
        %v892 = vld [vmem:[#allocation11 + $0x810] sm:$0xff]
        %v893 = vld [vmem:[#allocation11 + $0x818] sm:$0xff]
        %v894 = vld [vmem:[#allocation11 + $0x820] sm:$0xff]
        %v895 = vld [vmem:[#allocation11 + $0x828] sm:$0xff]
        %v896 = vld [vmem:[#allocation11 + $0x830] sm:$0xff]
        %v897 = vld [vmem:[#allocation11 + $0x838] sm:$0xff]
        %v898 = vld [vmem:[#allocation11 + $0x840] sm:$0xff]
        %v899 = vld [vmem:[#allocation11 + $0x848] sm:$0xff]
        %v900 = vld [vmem:[#allocation11 + $0x850] sm:$0xff]
        %v901 = vld [vmem:[#allocation11 + $0x858] sm:$0xff]
        %v902 = vld [vmem:[#allocation11 + $0x860] sm:$0xff]
        %v903 = vld [vmem:[#allocation11 + $0x868] sm:$0xff]
        %v904 = vld [vmem:[#allocation11 + $0x870] sm:$0xff]
        %v905 = vld [vmem:[#allocation11 + $0x878] sm:$0xff]
        %v906 = vld [vmem:[#allocation11 + $0x880] sm:$0xff]
        %v907 = vld [vmem:[#allocation11 + $0x888] sm:$0xff]
        %v908 = vld [vmem:[#allocation11 + $0x890] sm:$0xff]
        %v909 = vld [vmem:[#allocation11 + $0x898] sm:$0xff]
        %v910 = vld [vmem:[#allocation11 + $0x8a0] sm:$0xff]
        %v911 = vld [vmem:[#allocation11 + $0x8a8] sm:$0xff]
        %v912 = vld [vmem:[#allocation11 + $0x8b0] sm:$0xff]
        %v913 = vld [vmem:[#allocation11 + $0x8b8] sm:$0xff]
        %v914 = vld [vmem:[#allocation11 + $0x8c0] sm:$0xff]
        %v915 = vld [vmem:[#allocation11 + $0x8c8] sm:$0xff]
        %v916 = vld [vmem:[#allocation11 + $0x8d0] sm:$0xff]
        %v917 = vld [vmem:[#allocation11 + $0x8d8] sm:$0xff]
        %v918 = vld [vmem:[#allocation11 + $0x8e0] sm:$0xff]
        %v919 = vld [vmem:[#allocation11 + $0x8e8] sm:$0xff]
        %v920 = vld [vmem:[#allocation11 + $0x8f0] sm:$0xff]
        %v921 = vld [vmem:[#allocation11 + $0x8f8] sm:$0xff]
        %v922 = vld [vmem:[#allocation11 + $0x900] sm:$0xff]
        %v923 = vld [vmem:[#allocation11 + $0x908] sm:$0xff]
        %v924 = vld [vmem:[#allocation11 + $0x910] sm:$0xff]
        %v925 = vld [vmem:[#allocation11 + $0x918] sm:$0xff]
        %v926 = vld [vmem:[#allocation11 + $0x920] sm:$0xff]
        %v927 = vld [vmem:[#allocation11 + $0x928] sm:$0xff]
        %v928 = vld [vmem:[#allocation11 + $0x930] sm:$0xff]
        %v929 = vld [vmem:[#allocation11 + $0x938] sm:$0xff]
        %v930 = vld [vmem:[#allocation11 + $0x940] sm:$0xff]
        %v931 = vld [vmem:[#allocation11 + $0x948] sm:$0xff]
        %v932 = vld [vmem:[#allocation11 + $0x950] sm:$0xff]
        %v933 = vld [vmem:[#allocation11 + $0x958] sm:$0xff]
        %v934 = vld [vmem:[#allocation11 + $0x960] sm:$0xff]
        %v935 = vld [vmem:[#allocation11 + $0x968] sm:$0xff]
        %v936 = vld [vmem:[#allocation11 + $0x970] sm:$0xff]
        %v937 = vld [vmem:[#allocation11 + $0x978] sm:$0xff]
        %v938 = vld [vmem:[#allocation11 + $0x980] sm:$0xff]
        %v939 = vld [vmem:[#allocation11 + $0x988] sm:$0xff]
        %v940 = vld [vmem:[#allocation11 + $0x990] sm:$0xff]
        %v941 = vld [vmem:[#allocation11 + $0x998] sm:$0xff]
        %v942 = vld [vmem:[#allocation11 + $0x9a0] sm:$0xff]
        %v943 = vld [vmem:[#allocation11 + $0x9a8] sm:$0xff]
        %v944 = vld [vmem:[#allocation11 + $0x9b0] sm:$0xff]
        %v945 = vld [vmem:[#allocation11 + $0x9b8] sm:$0xff]
        %v946 = vld [vmem:[#allocation11 + $0x9c0] sm:$0xff]
        %v947 = vld [vmem:[#allocation11 + $0x9c8] sm:$0xff]
        %v948 = vld [vmem:[#allocation11 + $0x9d0] sm:$0xff]
        %v949 = vld [vmem:[#allocation11 + $0x9d8] sm:$0xff]
        %v950 = vld [vmem:[#allocation11 + $0x9e0] sm:$0xff]
        %v951 = vld [vmem:[#allocation11 + $0x9e8] sm:$0xff]
        %v952 = vld [vmem:[#allocation11 + $0x9f0] sm:$0xff]
        %v953 = vld [vmem:[#allocation11 + $0x9f8] sm:$0xff]
        %v954 = vld [vmem:[#allocation11 + $0xa00] sm:$0xff]
        %v955 = vld [vmem:[#allocation11 + $0xa08] sm:$0xff]
        %v956 = vld [vmem:[#allocation11 + $0xa10] sm:$0xff]
        %v957 = vld [vmem:[#allocation11 + $0xa18] sm:$0xff]
        %v958 = vld [vmem:[#allocation11 + $0xa20] sm:$0xff]
        %v959 = vld [vmem:[#allocation11 + $0xa28] sm:$0xff]
        %v960 = vld [vmem:[#allocation11 + $0xa30] sm:$0xff]
        %v961 = vld [vmem:[#allocation11 + $0xa38] sm:$0xff]
        %v962 = vld [vmem:[#allocation11 + $0xa40] sm:$0xff]
        %v963 = vld [vmem:[#allocation11 + $0xa48] sm:$0xff]
        %v964 = vld [vmem:[#allocation11 + $0xa50] sm:$0xff]
        %v965 = vld [vmem:[#allocation11 + $0xa58] sm:$0xff]
        %v966 = vld [vmem:[#allocation11 + $0xa60] sm:$0xff]
        %v967 = vld [vmem:[#allocation11 + $0xa68] sm:$0xff]
        %v968 = vld [vmem:[#allocation11 + $0xa70] sm:$0xff]
        %v969 = vld [vmem:[#allocation11 + $0xa78] sm:$0xff]
        %v970 = vld [vmem:[#allocation11 + $0xa80] sm:$0xff]
        %v971 = vld [vmem:[#allocation11 + $0xa88] sm:$0xff]
        %v972 = vld [vmem:[#allocation11 + $0xa90] sm:$0xff]
        %v973 = vld [vmem:[#allocation11 + $0xa98] sm:$0xff]
        %v974 = vld [vmem:[#allocation11 + $0xaa0] sm:$0xff]
        %v975 = vld [vmem:[#allocation11 + $0xaa8] sm:$0xff]
        %v976 = vld [vmem:[#allocation11 + $0xab0] sm:$0xff]
        %v977 = vld [vmem:[#allocation11 + $0xab8] sm:$0xff]
        %v978 = vld [vmem:[#allocation11 + $0xac0] sm:$0xff]
        %v979 = vld [vmem:[#allocation11 + $0xac8] sm:$0xff]
        %v980 = vld [vmem:[#allocation11 + $0xad0] sm:$0xff]
        %v981 = vld [vmem:[#allocation11 + $0xad8] sm:$0xff]
        %v982 = vld [vmem:[#allocation11 + $0xae0] sm:$0xff]
        %v983 = vld [vmem:[#allocation11 + $0xae8] sm:$0xff]
        %v984 = vld [vmem:[#allocation11 + $0xaf0] sm:$0xff]
        %v985 = vld [vmem:[#allocation11 + $0xaf8] sm:$0xff]
        %v986 = vld [vmem:[#allocation11 + $0xb00] sm:$0xff]
        %v987 = vld [vmem:[#allocation11 + $0xb08] sm:$0xff]
        %v988 = vld [vmem:[#allocation11 + $0xb10] sm:$0xff]
        %v989 = vld [vmem:[#allocation11 + $0xb18] sm:$0xff]
        %v990 = vld [vmem:[#allocation11 + $0xb20] sm:$0xff]
        %v991 = vld [vmem:[#allocation11 + $0xb28] sm:$0xff]
        %v992 = vld [vmem:[#allocation11 + $0xb30] sm:$0xff]
        %v993 = vld [vmem:[#allocation11 + $0xb38] sm:$0xff]
        %v994 = vld [vmem:[#allocation11 + $0xb40] sm:$0xff]
        %v995 = vld [vmem:[#allocation11 + $0xb48] sm:$0xff]
        %v996 = vld [vmem:[#allocation11 + $0xb50] sm:$0xff]
        %v997 = vld [vmem:[#allocation11 + $0xb58] sm:$0xff]
        %v998 = vld [vmem:[#allocation11 + $0xb60] sm:$0xff]
        %v999 = vld [vmem:[#allocation11 + $0xb68] sm:$0xff]
        %v1000 = vld [vmem:[#allocation11 + $0xb70] sm:$0xff]
        %v1001 = vld [vmem:[#allocation11 + $0xb78] sm:$0xff]
        %v1002 = vld [vmem:[#allocation11 + $0xb80] sm:$0xff]
        %v1003 = vld [vmem:[#allocation11 + $0xb88] sm:$0xff]
        %v1004 = vld [vmem:[#allocation11 + $0xb90] sm:$0xff]
        %v1005 = vld [vmem:[#allocation11 + $0xb98] sm:$0xff]
        %v1006 = vld [vmem:[#allocation11 + $0xba0] sm:$0xff]
        %v1007 = vld [vmem:[#allocation11 + $0xba8] sm:$0xff]
        %v1008 = vld [vmem:[#allocation11 + $0xbb0] sm:$0xff]
        %v1009 = vld [vmem:[#allocation11 + $0xbb8] sm:$0xff]
        %v1010 = vld [vmem:[#allocation11 + $0xbc0] sm:$0xff]
        %v1011 = vld [vmem:[#allocation11 + $0xbc8] sm:$0xff]
        %v1012 = vld [vmem:[#allocation11 + $0xbd0] sm:$0xff]
        %v1013 = vld [vmem:[#allocation11 + $0xbd8] sm:$0xff]
        %v1014 = vld [vmem:[#allocation11 + $0xbe0] sm:$0xff]
        %v1015 = vld [vmem:[#allocation11 + $0xbe8] sm:$0xff]
        %v1016 = vld [vmem:[#allocation11 + $0xbf0] sm:$0xff]
        %v1017 = vld [vmem:[#allocation11 + $0xbf8] sm:$0xff]
        %v1018 = vld [vmem:[#allocation11 + $0xc00] sm:$0xff]
        %v1019 = vld [vmem:[#allocation11 + $0xc08] sm:$0xff]
        %v1020 = vld [vmem:[#allocation11 + $0xc10] sm:$0xff]
        %v1021 = vld [vmem:[#allocation11 + $0xc18] sm:$0xff]
        %v1022 = vld [vmem:[#allocation11 + $0xc20] sm:$0xff]
        %v1023 = vld [vmem:[#allocation11 + $0xc28] sm:$0xff]
        %v1024 = vld [vmem:[#allocation11 + $0xc30] sm:$0xff]
        %v1025 = vld [vmem:[#allocation11 + $0xc38] sm:$0xff]
        %v1026 = vld [vmem:[#allocation11 + $0xc40] sm:$0xff]
        %v1027 = vld [vmem:[#allocation11 + $0xc48] sm:$0xff]
        %v1028 = vld [vmem:[#allocation11 + $0xc50] sm:$0xff]
        %v1029 = vld [vmem:[#allocation11 + $0xc58] sm:$0xff]
        %v1030 = vld [vmem:[#allocation11 + $0xc60] sm:$0xff]
        %v1031 = vld [vmem:[#allocation11 + $0xc68] sm:$0xff]
        %v1032 = vld [vmem:[#allocation11 + $0xc70] sm:$0xff]
        %v1033 = vld [vmem:[#allocation11 + $0xc78] sm:$0xff]
        %v1034 = vld [vmem:[#allocation11 + $0xc80] sm:$0xff]
        %v1035 = vld [vmem:[#allocation11 + $0xc88] sm:$0xff]
        %v1036 = vld [vmem:[#allocation11 + $0xc90] sm:$0xff]
        %v1037 = vld [vmem:[#allocation11 + $0xc98] sm:$0xff]
        %v1038 = vld [vmem:[#allocation11 + $0xca0] sm:$0xff]
        %v1039 = vld [vmem:[#allocation11 + $0xca8] sm:$0xff]
        %v1040 = vld [vmem:[#allocation11 + $0xcb0] sm:$0xff]
        %v1041 = vld [vmem:[#allocation11 + $0xcb8] sm:$0xff]
        %v1042 = vld [vmem:[#allocation11 + $0xcc0] sm:$0xff]
        %v1043 = vld [vmem:[#allocation11 + $0xcc8] sm:$0xff]
        %v1044 = vld [vmem:[#allocation11 + $0xcd0] sm:$0xff]
        %v1045 = vld [vmem:[#allocation11 + $0xcd8] sm:$0xff]
        %v1046 = vld [vmem:[#allocation11 + $0xce0] sm:$0xff]
        %v1047 = vld [vmem:[#allocation11 + $0xce8] sm:$0xff]
        %v1048 = vld [vmem:[#allocation11 + $0xcf0] sm:$0xff]
        %v1049 = vld [vmem:[#allocation11 + $0xcf8] sm:$0xff]
        %v1050 = vld [vmem:[#allocation11 + $0xd00] sm:$0xff]
        %v1051 = vld [vmem:[#allocation11 + $0xd08] sm:$0xff]
        %v1052 = vld [vmem:[#allocation11 + $0xd10] sm:$0xff]
        %v1053 = vld [vmem:[#allocation11 + $0xd18] sm:$0xff]
        %v1054 = vld [vmem:[#allocation11 + $0xd20] sm:$0xff]
        %v1055 = vld [vmem:[#allocation11 + $0xd28] sm:$0xff]
        %v1056 = vld [vmem:[#allocation11 + $0xd30] sm:$0xff]
        %v1057 = vld [vmem:[#allocation11 + $0xd38] sm:$0xff]
        %v1058 = vld [vmem:[#allocation11 + $0xd40] sm:$0xff]
        %v1059 = vld [vmem:[#allocation11 + $0xd48] sm:$0xff]
        %v1060 = vld [vmem:[#allocation11 + $0xd50] sm:$0xff]
        %v1061 = vld [vmem:[#allocation11 + $0xd58] sm:$0xff]
        %v1062 = vld [vmem:[#allocation11 + $0xd60] sm:$0xff]
        %v1063 = vld [vmem:[#allocation11 + $0xd68] sm:$0xff]
        %v1064 = vld [vmem:[#allocation11 + $0xd70] sm:$0xff]
        %v1065 = vld [vmem:[#allocation11 + $0xd78] sm:$0xff]
        %v1066 = vld [vmem:[#allocation11 + $0xd80] sm:$0xff]
        %v1067 = vld [vmem:[#allocation11 + $0xd88] sm:$0xff]
        %v1068 = vld [vmem:[#allocation11 + $0xd90] sm:$0xff]
        %v1069 = vld [vmem:[#allocation11 + $0xd98] sm:$0xff]
        %v1070 = vld [vmem:[#allocation11 + $0xda0] sm:$0xff]
        %v1071 = vld [vmem:[#allocation11 + $0xda8] sm:$0xff]
        %v1072 = vld [vmem:[#allocation11 + $0xdb0] sm:$0xff]
        %v1073 = vld [vmem:[#allocation11 + $0xdb8] sm:$0xff]
        %v1074 = vld [vmem:[#allocation11 + $0xdc0] sm:$0xff]
        %v1075 = vld [vmem:[#allocation11 + $0xdc8] sm:$0xff]
        %v1076 = vld [vmem:[#allocation11 + $0xdd0] sm:$0xff]
        %v1077 = vld [vmem:[#allocation11 + $0xdd8] sm:$0xff]
        %v1078 = vld [vmem:[#allocation11 + $0xde0] sm:$0xff]
        %v1079 = vld [vmem:[#allocation11 + $0xde8] sm:$0xff]
        %v1080 = vld [vmem:[#allocation11 + $0xdf0] sm:$0xff]
        %v1081 = vld [vmem:[#allocation11 + $0xdf8] sm:$0xff]
        %v1082 = vld [vmem:[#allocation11 + $0xe00] sm:$0xff]
        %v1083 = vld [vmem:[#allocation11 + $0xe08] sm:$0xff]
        %v1084 = vld [vmem:[#allocation11 + $0xe10] sm:$0xff]
        %v1085 = vld [vmem:[#allocation11 + $0xe18] sm:$0xff]
        %v1086 = vld [vmem:[#allocation11 + $0xe20] sm:$0xff]
        %v1087 = vld [vmem:[#allocation11 + $0xe28] sm:$0xff]
        %v1088 = vld [vmem:[#allocation11 + $0xe30] sm:$0xff]
        %v1089 = vld [vmem:[#allocation11 + $0xe38] sm:$0xff]
        %v1090 = vld [vmem:[#allocation11 + $0xe40] sm:$0xff]
        %v1091 = vld [vmem:[#allocation11 + $0xe48] sm:$0xff]
        %v1092 = vld [vmem:[#allocation11 + $0xe50] sm:$0xff]
        %v1093 = vld [vmem:[#allocation11 + $0xe58] sm:$0xff]
        %v1094 = vld [vmem:[#allocation11 + $0xe60] sm:$0xff]
        %v1095 = vld [vmem:[#allocation11 + $0xe68] sm:$0xff]
        %v1096 = vld [vmem:[#allocation11 + $0xe70] sm:$0xff]
        %v1097 = vld [vmem:[#allocation11 + $0xe78] sm:$0xff]
        %v1098 = vld [vmem:[#allocation11 + $0xe80] sm:$0xff]
        %v1099 = vld [vmem:[#allocation11 + $0xe88] sm:$0xff]
        %v1100 = vld [vmem:[#allocation11 + $0xe90] sm:$0xff]
        %v1101 = vld [vmem:[#allocation11 + $0xe98] sm:$0xff]
        %v1102 = vld [vmem:[#allocation11 + $0xea0] sm:$0xff]
        %v1103 = vld [vmem:[#allocation11 + $0xea8] sm:$0xff]
        %v1104 = vld [vmem:[#allocation11 + $0xeb0] sm:$0xff]
        %v1105 = vld [vmem:[#allocation11 + $0xeb8] sm:$0xff]
        %v1106 = vld [vmem:[#allocation11 + $0xec0] sm:$0xff]
        %v1107 = vld [vmem:[#allocation11 + $0xec8] sm:$0xff]
        %v1108 = vld [vmem:[#allocation11 + $0xed0] sm:$0xff]
        %v1109 = vld [vmem:[#allocation11 + $0xed8] sm:$0xff]
        %v1110 = vld [vmem:[#allocation11 + $0xee0] sm:$0xff]
        %v1111 = vld [vmem:[#allocation11 + $0xee8] sm:$0xff]
        %v1112 = vld [vmem:[#allocation11 + $0xef0] sm:$0xff]
        %v1113 = vld [vmem:[#allocation11 + $0xef8] sm:$0xff]
        %v1114 = vld [vmem:[#allocation11 + $0xf00] sm:$0xff]
        %v1115 = vld [vmem:[#allocation11 + $0xf08] sm:$0xff]
        %v1116 = vld [vmem:[#allocation11 + $0xf10] sm:$0xff]
        %v1117 = vld [vmem:[#allocation11 + $0xf18] sm:$0xff]
        %v1118 = vld [vmem:[#allocation11 + $0xf20] sm:$0xff]
        %v1119 = vld [vmem:[#allocation11 + $0xf28] sm:$0xff]
        %v1120 = vld [vmem:[#allocation11 + $0xf30] sm:$0xff]
        %v1121 = vld [vmem:[#allocation11 + $0xf38] sm:$0xff]
        %v1122 = vld [vmem:[#allocation11 + $0xf40] sm:$0xff]
        %v1123 = vld [vmem:[#allocation11 + $0xf48] sm:$0xff]
        %v1124 = vld [vmem:[#allocation11 + $0xf50] sm:$0xff]
        %v1125 = vld [vmem:[#allocation11 + $0xf58] sm:$0xff]
        %v1126 = vld [vmem:[#allocation11 + $0xf60] sm:$0xff]
        %v1127 = vld [vmem:[#allocation11 + $0xf68] sm:$0xff]
        %v1128 = vld [vmem:[#allocation11 + $0xf70] sm:$0xff]
        %v1129 = vld [vmem:[#allocation11 + $0xf78] sm:$0xff]
        %v1130 = vld [vmem:[#allocation11 + $0xf80] sm:$0xff]
        %v1131 = vld [vmem:[#allocation11 + $0xf88] sm:$0xff]
        %v1132 = vld [vmem:[#allocation11 + $0xf90] sm:$0xff]
        %v1133 = vld [vmem:[#allocation11 + $0xf98] sm:$0xff]
        %v1134 = vld [vmem:[#allocation11 + $0xfa0] sm:$0xff]
        %v1135 = vld [vmem:[#allocation11 + $0xfa8] sm:$0xff]
        %v1136 = vld [vmem:[#allocation11 + $0xfb0] sm:$0xff]
        %v1137 = vld [vmem:[#allocation11 + $0xfb8] sm:$0xff]
        %v1138 = vld [vmem:[#allocation11 + $0xfc0] sm:$0xff]
        %v1139 = vld [vmem:[#allocation11 + $0xfc8] sm:$0xff]
        %v1140 = vld [vmem:[#allocation11 + $0xfd0] sm:$0xff]
        %v1141 = vld [vmem:[#allocation11 + $0xfd8] sm:$0xff]
        %v1142 = vld [vmem:[#allocation11 + $0xfe0] sm:$0xff]
        %v1143 = vld [vmem:[#allocation11 + $0xfe8] sm:$0xff]
        %v1144 = vld [vmem:[#allocation11 + $0xff0] sm:$0xff]
        %v1145 = vld [vmem:[#allocation11 + $0xff8] sm:$0xff]
        %1146 = vmatprep.subr.mxu0 %v635
        %1147 = vmatpush1.msra.mxu0 %v634
        %1148 = vmatprep.subr.mxu0 %v639
        %1149 = vmatpush1.msra.mxu0 %v638
        %1150 = vmatprep.subr.mxu0 %v643
        %1151 = vmatpush1.msra.mxu0 %v642
        %1152 = vmatprep.subr.mxu0 %v647
        %1153 = vmatpush1.msra.mxu0 %v646
        %1154 = vmatprep.subr.mxu0 %v651
        %1155 = vmatpush1.msra.mxu0 %v650
        %1156 = vmatprep.subr.mxu0 %v655
        %1157 = vmatpush1.msra.mxu0 %v654
        %1158 = vmatprep.subr.mxu0 %v659
        %1159 = vmatpush1.msra.mxu0 %v658
        %1160 = vmatprep.subr.mxu0 %v663
        %1161 = vmatpush1.msra.mxu0 %v662
        %1162 = vmatprep.subr.mxu0 %v667
        %1163 = vmatpush1.msra.mxu0 %v666
        %1164 = vmatprep.subr.mxu0 %v671
        %1165 = vmatpush1.msra.mxu0 %v670
        %1166 = vmatprep.subr.mxu0 %v675
        %1167 = vmatpush1.msra.mxu0 %v674
        %1168 = vmatprep.subr.mxu0 %v679
        %1169 = vmatpush1.msra.mxu0 %v678
        %1170 = vmatprep.subr.mxu0 %v683
        %1171 = vmatpush1.msra.mxu0 %v682
        %1172 = vmatprep.subr.mxu0 %v687
        %1173 = vmatpush1.msra.mxu0 %v686
        %1174 = vmatprep.subr.mxu0 %v691
        %1175 = vmatpush1.msra.mxu0 %v690
        %1176 = vmatprep.subr.mxu0 %v695
        %1177 = vmatpush1.msra.mxu0 %v694
        %1178 = vmatprep.subr.mxu0 %v699
        %1179 = vmatpush1.msra.mxu0 %v698
        %1180 = vmatprep.subr.mxu0 %v703
        %1181 = vmatpush1.msra.mxu0 %v702
        %1182 = vmatprep.subr.mxu0 %v707
        %1183 = vmatpush1.msra.mxu0 %v706
        %1184 = vmatprep.subr.mxu0 %v711
        %1185 = vmatpush1.msra.mxu0 %v710
        %1186 = vmatprep.subr.mxu0 %v715
        %1187 = vmatpush1.msra.mxu0 %v714
        %1188 = vmatprep.subr.mxu0 %v719
        %1189 = vmatpush1.msra.mxu0 %v718
        %1190 = vmatprep.subr.mxu0 %v723
        %1191 = vmatpush1.msra.mxu0 %v722
        %1192 = vmatprep.subr.mxu0 %v727
        %1193 = vmatpush1.msra.mxu0 %v726
        %1194 = vmatprep.subr.mxu0 %v731
        %1195 = vmatpush1.msra.mxu0 %v730
        %1196 = vmatprep.subr.mxu0 %v735
        %1197 = vmatpush1.msra.mxu0 %v734
        %1198 = vmatprep.subr.mxu0 %v739
        %1199 = vmatpush1.msra.mxu0 %v738
        %1200 = vmatprep.subr.mxu0 %v743
        %1201 = vmatpush1.msra.mxu0 %v742
        %1202 = vmatprep.subr.mxu0 %v747
        %1203 = vmatpush1.msra.mxu0 %v746
        %1204 = vmatprep.subr.mxu0 %v751
        %1205 = vmatpush1.msra.mxu0 %v750
        %1206 = vmatprep.subr.mxu0 %v755
        %1207 = vmatpush1.msra.mxu0 %v754
        %1208 = vmatprep.subr.mxu0 %v759
        %1209 = vmatpush1.msra.mxu0 %v758
        %1210 = vmatprep.mubr.f32.mxu0 %v586
        %1211 = vmatmul.mubr.f32.gmra.mrb[0].mxu0 %v579
        %v1212 = vpop.f32.mrb[0].mxu0
        %v1213 = vadd.f32 0.0, %v1212
        %v1214 = vpop.f32.mrb[0].mxu0
        %v1215 = vadd.f32 0.0, %v1214
        %1216 = vdwg.mxu0
        %1217 = vmatprep.subr.mxu0 %v763
        %1218 = vmatpush1.msra.mxu0 %v762
        %1219 = vmatprep.subr.mxu0 %v767
        %1220 = vmatpush1.msra.mxu0 %v766
        %1221 = vmatprep.subr.mxu0 %v771
        %1222 = vmatpush1.msra.mxu0 %v770
        %1223 = vmatprep.subr.mxu0 %v775
        %1224 = vmatpush1.msra.mxu0 %v774
        %1225 = vmatprep.subr.mxu0 %v779
        %1226 = vmatpush1.msra.mxu0 %v778
        %1227 = vmatprep.subr.mxu0 %v783
        %1228 = vmatpush1.msra.mxu0 %v782
        %1229 = vmatprep.subr.mxu0 %v787
        %1230 = vmatpush1.msra.mxu0 %v786
        %1231 = vmatprep.subr.mxu0 %v791
        %1232 = vmatpush1.msra.mxu0 %v790
        %1233 = vmatprep.subr.mxu0 %v795
        %1234 = vmatpush1.msra.mxu0 %v794
        %1235 = vmatprep.subr.mxu0 %v799
        %1236 = vmatpush1.msra.mxu0 %v798
        %1237 = vmatprep.subr.mxu0 %v803
        %1238 = vmatpush1.msra.mxu0 %v802
        %1239 = vmatprep.subr.mxu0 %v807
        %1240 = vmatpush1.msra.mxu0 %v806
        %1241 = vmatprep.subr.mxu0 %v811
        %1242 = vmatpush1.msra.mxu0 %v810
        %1243 = vmatprep.subr.mxu0 %v815
        %1244 = vmatpush1.msra.mxu0 %v814
        %1245 = vmatprep.subr.mxu0 %v819
        %1246 = vmatpush1.msra.mxu0 %v818
        %1247 = vmatprep.subr.mxu0 %v823
        %1248 = vmatpush1.msra.mxu0 %v822
        %1249 = vmatprep.subr.mxu0 %v827
        %1250 = vmatpush1.msra.mxu0 %v826
        %1251 = vmatprep.subr.mxu0 %v831
        %1252 = vmatpush1.msra.mxu0 %v830
        %1253 = vmatprep.subr.mxu0 %v835
        %1254 = vmatpush1.msra.mxu0 %v834
        %1255 = vmatprep.subr.mxu0 %v839
        %1256 = vmatpush1.msra.mxu0 %v838
        %1257 = vmatprep.subr.mxu0 %v843
        %1258 = vmatpush1.msra.mxu0 %v842
        %1259 = vmatprep.subr.mxu0 %v847
        %1260 = vmatpush1.msra.mxu0 %v846
        %1261 = vmatprep.subr.mxu0 %v851
        %1262 = vmatpush1.msra.mxu0 %v850
        %1263 = vmatprep.subr.mxu0 %v855
        %1264 = vmatpush1.msra.mxu0 %v854
        %1265 = vmatprep.subr.mxu0 %v859
        %1266 = vmatpush1.msra.mxu0 %v858
        %1267 = vmatprep.subr.mxu0 %v863
        %1268 = vmatpush1.msra.mxu0 %v862
        %1269 = vmatprep.subr.mxu0 %v867
        %1270 = vmatpush1.msra.mxu0 %v866
        %1271 = vmatprep.subr.mxu0 %v871
        %1272 = vmatpush1.msra.mxu0 %v870
        %1273 = vmatprep.subr.mxu0 %v875
        %1274 = vmatpush1.msra.mxu0 %v874
        %1275 = vmatprep.subr.mxu0 %v879
        %1276 = vmatpush1.msra.mxu0 %v878
        %1277 = vmatprep.subr.mxu0 %v883
        %1278 = vmatpush1.msra.mxu0 %v882
        %1279 = vmatprep.subr.mxu0 %v887
        %1280 = vmatpush1.msra.mxu0 %v886
        %1281 = vmatprep.mubr.f32.mxu0 %v600
        %1282 = vmatmul.mubr.f32.gmra.mrb[0].mxu0 %v593
        %v1283 = vpop.f32.mrb[0].mxu0
        %v1284 = vadd.f32 %v1213, %v1283
        %v1285 = vpop.f32.mrb[0].mxu0
        %v1286 = vadd.f32 %v1215, %v1285
        %1287 = vdwg.mxu0
        %1288 = vmatprep.subr.mxu0 %v891
        %1289 = vmatpush1.msra.mxu0 %v890
        %1290 = vmatprep.subr.mxu0 %v895
        %1291 = vmatpush1.msra.mxu0 %v894
        %1292 = vmatprep.subr.mxu0 %v899
        %1293 = vmatpush1.msra.mxu0 %v898
        %1294 = vmatprep.subr.mxu0 %v903
        %1295 = vmatpush1.msra.mxu0 %v902
        %1296 = vmatprep.subr.mxu0 %v907
        %1297 = vmatpush1.msra.mxu0 %v906
        %1298 = vmatprep.subr.mxu0 %v911
        %1299 = vmatpush1.msra.mxu0 %v910
        %1300 = vmatprep.subr.mxu0 %v915
        %1301 = vmatpush1.msra.mxu0 %v914
        %1302 = vmatprep.subr.mxu0 %v919
        %1303 = vmatpush1.msra.mxu0 %v918
        %1304 = vmatprep.subr.mxu0 %v923
        %1305 = vmatpush1.msra.mxu0 %v922
        %1306 = vmatprep.subr.mxu0 %v927
        %1307 = vmatpush1.msra.mxu0 %v926
        %1308 = vmatprep.subr.mxu0 %v931
        %1309 = vmatpush1.msra.mxu0 %v930
        %1310 = vmatprep.subr.mxu0 %v935
        %1311 = vmatpush1.msra.mxu0 %v934
        %1312 = vmatprep.subr.mxu0 %v939
        %1313 = vmatpush1.msra.mxu0 %v938
        %1314 = vmatprep.subr.mxu0 %v943
        %1315 = vmatpush1.msra.mxu0 %v942
        %1316 = vmatprep.subr.mxu0 %v947
        %1317 = vmatpush1.msra.mxu0 %v946
        %1318 = vmatprep.subr.mxu0 %v951
        %1319 = vmatpush1.msra.mxu0 %v950
        %1320 = vmatprep.subr.mxu0 %v955
        %1321 = vmatpush1.msra.mxu0 %v954
        %1322 = vmatprep.subr.mxu0 %v959
        %1323 = vmatpush1.msra.mxu0 %v958
        %1324 = vmatprep.subr.mxu0 %v963
        %1325 = vmatpush1.msra.mxu0 %v962
        %1326 = vmatprep.subr.mxu0 %v967
        %1327 = vmatpush1.msra.mxu0 %v966
        %1328 = vmatprep.subr.mxu0 %v971
        %1329 = vmatpush1.msra.mxu0 %v970
        %1330 = vmatprep.subr.mxu0 %v975
        %1331 = vmatpush1.msra.mxu0 %v974
        %1332 = vmatprep.subr.mxu0 %v979
        %1333 = vmatpush1.msra.mxu0 %v978
        %1334 = vmatprep.subr.mxu0 %v983
        %1335 = vmatpush1.msra.mxu0 %v982
        %1336 = vmatprep.subr.mxu0 %v987
        %1337 = vmatpush1.msra.mxu0 %v986
        %1338 = vmatprep.subr.mxu0 %v991
        %1339 = vmatpush1.msra.mxu0 %v990
        %1340 = vmatprep.subr.mxu0 %v995
        %1341 = vmatpush1.msra.mxu0 %v994
        %1342 = vmatprep.subr.mxu0 %v999
        %1343 = vmatpush1.msra.mxu0 %v998
        %1344 = vmatprep.subr.mxu0 %v1003
        %1345 = vmatpush1.msra.mxu0 %v1002
        %1346 = vmatprep.subr.mxu0 %v1007
        %1347 = vmatpush1.msra.mxu0 %v1006
        %1348 = vmatprep.subr.mxu0 %v1011
        %1349 = vmatpush1.msra.mxu0 %v1010
        %1350 = vmatprep.subr.mxu0 %v1015
        %1351 = vmatpush1.msra.mxu0 %v1014
        %1352 = vmatprep.mubr.f32.mxu0 %v631
        %1353 = vmatmul.mubr.f32.gmra.mrb[0].mxu0 %v630
        %v1354 = vpop.f32.mrb[0].mxu0
        %v1355 = vadd.f32 %v1284, %v1354
        %v1356 = vpop.f32.mrb[0].mxu0
        %v1357 = vadd.f32 %v1286, %v1356
        %1358 = vdwg.mxu0
        %1359 = vmatprep.subr.mxu0 %v1019
        %1360 = vmatpush1.msra.mxu0 %v1018
        %1361 = vmatprep.subr.mxu0 %v1023
        %1362 = vmatpush1.msra.mxu0 %v1022
        %1363 = vmatprep.subr.mxu0 %v1027
        %1364 = vmatpush1.msra.mxu0 %v1026
        %1365 = vmatprep.subr.mxu0 %v1031
        %1366 = vmatpush1.msra.mxu0 %v1030
        %1367 = vmatprep.subr.mxu0 %v1035
        %1368 = vmatpush1.msra.mxu0 %v1034
        %1369 = vmatprep.subr.mxu0 %v1039
        %1370 = vmatpush1.msra.mxu0 %v1038
        %1371 = vmatprep.subr.mxu0 %v1043
        %1372 = vmatpush1.msra.mxu0 %v1042
        %1373 = vmatprep.subr.mxu0 %v1047
        %1374 = vmatpush1.msra.mxu0 %v1046
        %1375 = vmatprep.subr.mxu0 %v1051
        %1376 = vmatpush1.msra.mxu0 %v1050
        %1377 = vmatprep.subr.mxu0 %v1055
        %1378 = vmatpush1.msra.mxu0 %v1054
        %1379 = vmatprep.subr.mxu0 %v1059
        %1380 = vmatpush1.msra.mxu0 %v1058
        %1381 = vmatprep.subr.mxu0 %v1063
        %1382 = vmatpush1.msra.mxu0 %v1062
        %1383 = vmatprep.subr.mxu0 %v1067
        %1384 = vmatpush1.msra.mxu0 %v1066
        %1385 = vmatprep.subr.mxu0 %v1071
        %1386 = vmatpush1.msra.mxu0 %v1070
        %1387 = vmatprep.subr.mxu0 %v1075
        %1388 = vmatpush1.msra.mxu0 %v1074
        %1389 = vmatprep.subr.mxu0 %v1079
        %1390 = vmatpush1.msra.mxu0 %v1078
        %1391 = vmatprep.subr.mxu0 %v1083
        %1392 = vmatpush1.msra.mxu0 %v1082
        %1393 = vmatprep.subr.mxu0 %v1087
        %1394 = vmatpush1.msra.mxu0 %v1086
        %1395 = vmatprep.subr.mxu0 %v1091
        %1396 = vmatpush1.msra.mxu0 %v1090
        %1397 = vmatprep.subr.mxu0 %v1095
        %1398 = vmatpush1.msra.mxu0 %v1094
        %1399 = vmatprep.subr.mxu0 %v1099
        %1400 = vmatpush1.msra.mxu0 %v1098
        %1401 = vmatprep.subr.mxu0 %v1103
        %1402 = vmatpush1.msra.mxu0 %v1102
        %1403 = vmatprep.subr.mxu0 %v1107
        %1404 = vmatpush1.msra.mxu0 %v1106
        %1405 = vmatprep.subr.mxu0 %v1111
        %1406 = vmatpush1.msra.mxu0 %v1110
        %1407 = vmatprep.subr.mxu0 %v1115
        %1408 = vmatpush1.msra.mxu0 %v1114
        %1409 = vmatprep.subr.mxu0 %v1119
        %1410 = vmatpush1.msra.mxu0 %v1118
        %1411 = vmatprep.subr.mxu0 %v1123
        %1412 = vmatpush1.msra.mxu0 %v1122
        %1413 = vmatprep.subr.mxu0 %v1127
        %1414 = vmatpush1.msra.mxu0 %v1126
        %1415 = vmatprep.subr.mxu0 %v1131
        %1416 = vmatpush1.msra.mxu0 %v1130
        %1417 = vmatprep.subr.mxu0 %v1135
        %1418 = vmatpush1.msra.mxu0 %v1134
        %1419 = vmatprep.subr.mxu0 %v1139
        %1420 = vmatpush1.msra.mxu0 %v1138
        %1421 = vmatprep.subr.mxu0 %v1143
        %1422 = vmatpush1.msra.mxu0 %v1142
        %1423 = vmatprep.mubr.f32.mxu0 %v633
        %1424 = vmatmul.mubr.f32.gmra.mrb[0].mxu0 %v632
        %v1425 = vpop.f32.mrb[0].mxu0
        %v1426 = vadd.f32 %v1355, %v1425
        %v1427 = vpop.f32.mrb[0].mxu0
        %v1428 = vadd.f32 %v1357, %v1427
        %1429 = vdwg.mxu0
        %1430 = vmatprep.subr.mxu0 %v637
        %1431 = vmatpush1.msra.mxu0 %v636
        %1432 = vmatprep.subr.mxu0 %v641
        %1433 = vmatpush1.msra.mxu0 %v640
        %1434 = vmatprep.subr.mxu0 %v645
        %1435 = vmatpush1.msra.mxu0 %v644
        %1436 = vmatprep.subr.mxu0 %v649
        %1437 = vmatpush1.msra.mxu0 %v648
        %1438 = vmatprep.subr.mxu0 %v653
        %1439 = vmatpush1.msra.mxu0 %v652
        %1440 = vmatprep.subr.mxu0 %v657
        %1441 = vmatpush1.msra.mxu0 %v656
        %1442 = vmatprep.subr.mxu0 %v661
        %1443 = vmatpush1.msra.mxu0 %v660
        %1444 = vmatprep.subr.mxu0 %v665
        %1445 = vmatpush1.msra.mxu0 %v664
        %1446 = vmatprep.subr.mxu0 %v669
        %1447 = vmatpush1.msra.mxu0 %v668
        %1448 = vmatprep.subr.mxu0 %v673
        %1449 = vmatpush1.msra.mxu0 %v672
        %1450 = vmatprep.subr.mxu0 %v677
        %1451 = vmatpush1.msra.mxu0 %v676
        %1452 = vmatprep.subr.mxu0 %v681
        %1453 = vmatpush1.msra.mxu0 %v680
        %1454 = vmatprep.subr.mxu0 %v685
        %1455 = vmatpush1.msra.mxu0 %v684
        %1456 = vmatprep.subr.mxu0 %v689
        %1457 = vmatpush1.msra.mxu0 %v688
        %1458 = vmatprep.subr.mxu0 %v693
        %1459 = vmatpush1.msra.mxu0 %v692
        %1460 = vmatprep.subr.mxu0 %v697
        %1461 = vmatpush1.msra.mxu0 %v696
        %1462 = vmatprep.subr.mxu0 %v701
        %1463 = vmatpush1.msra.mxu0 %v700
        %1464 = vmatprep.subr.mxu0 %v705
        %1465 = vmatpush1.msra.mxu0 %v704
        %1466 = vmatprep.subr.mxu0 %v709
        %1467 = vmatpush1.msra.mxu0 %v708
        %1468 = vmatprep.subr.mxu0 %v713
        %1469 = vmatpush1.msra.mxu0 %v712
        %1470 = vmatprep.subr.mxu0 %v717
        %1471 = vmatpush1.msra.mxu0 %v716
        %1472 = vmatprep.subr.mxu0 %v721
        %1473 = vmatpush1.msra.mxu0 %v720
        %1474 = vmatprep.subr.mxu0 %v725
        %1475 = vmatpush1.msra.mxu0 %v724
        %1476 = vmatprep.subr.mxu0 %v729
        %1477 = vmatpush1.msra.mxu0 %v728
        %1478 = vmatprep.subr.mxu0 %v733
        %1479 = vmatpush1.msra.mxu0 %v732
        %1480 = vmatprep.subr.mxu0 %v737
        %1481 = vmatpush1.msra.mxu0 %v736
        %1482 = vmatprep.subr.mxu0 %v741
        %1483 = vmatpush1.msra.mxu0 %v740
        %1484 = vmatprep.subr.mxu0 %v745
        %1485 = vmatpush1.msra.mxu0 %v744
        %1486 = vmatprep.subr.mxu0 %v749
        %1487 = vmatpush1.msra.mxu0 %v748
        %1488 = vmatprep.subr.mxu0 %v753
        %1489 = vmatpush1.msra.mxu0 %v752
        %1490 = vmatprep.subr.mxu0 %v757
        %1491 = vmatpush1.msra.mxu0 %v756
        %1492 = vmatprep.subr.mxu0 %v761
        %1493 = vmatpush1.msra.mxu0 %v760
        %1494 = vmatprep.mubr.f32.mxu0 %v586
        %1495 = vmatmul.mubr.f32.gmra.mrb[0].mxu0 %v579
        %v1496 = vpop.f32.mrb[0].mxu0
        %v1497 = vadd.f32 0.0, %v1496
        %v1498 = vpop.f32.mrb[0].mxu0
        %v1499 = vadd.f32 0.0, %v1498
        %1500 = vdwg.mxu0
        %1501 = vmatprep.subr.mxu0 %v765
        %1502 = vmatpush1.msra.mxu0 %v764
        %1503 = vmatprep.subr.mxu0 %v769
        %1504 = vmatpush1.msra.mxu0 %v768
        %1505 = vmatprep.subr.mxu0 %v773
        %1506 = vmatpush1.msra.mxu0 %v772
        %1507 = vmatprep.subr.mxu0 %v777
        %1508 = vmatpush1.msra.mxu0 %v776
        %1509 = vmatprep.subr.mxu0 %v781
        %1510 = vmatpush1.msra.mxu0 %v780
        %1511 = vmatprep.subr.mxu0 %v785
        %1512 = vmatpush1.msra.mxu0 %v784
        %1513 = vmatprep.subr.mxu0 %v789
        %1514 = vmatpush1.msra.mxu0 %v788
        %1515 = vmatprep.subr.mxu0 %v793
        %1516 = vmatpush1.msra.mxu0 %v792
        %1517 = vmatprep.subr.mxu0 %v797
        %1518 = vmatpush1.msra.mxu0 %v796
        %1519 = vmatprep.subr.mxu0 %v801
        %1520 = vmatpush1.msra.mxu0 %v800
        %1521 = vmatprep.subr.mxu0 %v805
        %1522 = vmatpush1.msra.mxu0 %v804
        %1523 = vmatprep.subr.mxu0 %v809
        %1524 = vmatpush1.msra.mxu0 %v808
        %1525 = vmatprep.subr.mxu0 %v813
        %1526 = vmatpush1.msra.mxu0 %v812
        %1527 = vmatprep.subr.mxu0 %v817
        %1528 = vmatpush1.msra.mxu0 %v816
        %1529 = vmatprep.subr.mxu0 %v821
        %1530 = vmatpush1.msra.mxu0 %v820
        %1531 = vmatprep.subr.mxu0 %v825
        %1532 = vmatpush1.msra.mxu0 %v824
        %1533 = vmatprep.subr.mxu0 %v829
        %1534 = vmatpush1.msra.mxu0 %v828
        %1535 = vmatprep.subr.mxu0 %v833
        %1536 = vmatpush1.msra.mxu0 %v832
        %1537 = vmatprep.subr.mxu0 %v837
        %1538 = vmatpush1.msra.mxu0 %v836
        %1539 = vmatprep.subr.mxu0 %v841
        %1540 = vmatpush1.msra.mxu0 %v840
        %1541 = vmatprep.subr.mxu0 %v845
        %1542 = vmatpush1.msra.mxu0 %v844
        %1543 = vmatprep.subr.mxu0 %v849
        %1544 = vmatpush1.msra.mxu0 %v848
        %1545 = vmatprep.subr.mxu0 %v853
        %1546 = vmatpush1.msra.mxu0 %v852
        %1547 = vmatprep.subr.mxu0 %v857
        %1548 = vmatpush1.msra.mxu0 %v856
        %1549 = vmatprep.subr.mxu0 %v861
        %1550 = vmatpush1.msra.mxu0 %v860
        %1551 = vmatprep.subr.mxu0 %v865
        %1552 = vmatpush1.msra.mxu0 %v864
        %1553 = vmatprep.subr.mxu0 %v869
        %1554 = vmatpush1.msra.mxu0 %v868
        %1555 = vmatprep.subr.mxu0 %v873
        %1556 = vmatpush1.msra.mxu0 %v872
        %1557 = vmatprep.subr.mxu0 %v877
        %1558 = vmatpush1.msra.mxu0 %v876
        %1559 = vmatprep.subr.mxu0 %v881
        %1560 = vmatpush1.msra.mxu0 %v880
        %1561 = vmatprep.subr.mxu0 %v885
        %1562 = vmatpush1.msra.mxu0 %v884
        %1563 = vmatprep.subr.mxu0 %v889
        %1564 = vmatpush1.msra.mxu0 %v888
        %1565 = vmatprep.mubr.f32.mxu0 %v600
        %1566 = vmatmul.mubr.f32.gmra.mrb[0].mxu0 %v593
        %v1567 = vpop.f32.mrb[0].mxu0
        %v1568 = vadd.f32 %v1497, %v1567
        %v1569 = vpop.f32.mrb[0].mxu0
        %v1570 = vadd.f32 %v1499, %v1569
        %1571 = vdwg.mxu0
        %1572 = vmatprep.subr.mxu0 %v893
        %1573 = vmatpush1.msra.mxu0 %v892
        %1574 = vmatprep.subr.mxu0 %v897
        %1575 = vmatpush1.msra.mxu0 %v896
        %1576 = vmatprep.subr.mxu0 %v901
        %1577 = vmatpush1.msra.mxu0 %v900
        %1578 = vmatprep.subr.mxu0 %v905
        %1579 = vmatpush1.msra.mxu0 %v904
        %1580 = vmatprep.subr.mxu0 %v909
        %1581 = vmatpush1.msra.mxu0 %v908
        %1582 = vmatprep.subr.mxu0 %v913
        %1583 = vmatpush1.msra.mxu0 %v912
        %1584 = vmatprep.subr.mxu0 %v917
        %1585 = vmatpush1.msra.mxu0 %v916
        %1586 = vmatprep.subr.mxu0 %v921
        %1587 = vmatpush1.msra.mxu0 %v920
        %1588 = vmatprep.subr.mxu0 %v925
        %1589 = vmatpush1.msra.mxu0 %v924
        %1590 = vmatprep.subr.mxu0 %v929
        %1591 = vmatpush1.msra.mxu0 %v928
        %1592 = vmatprep.subr.mxu0 %v933
        %1593 = vmatpush1.msra.mxu0 %v932
        %1594 = vmatprep.subr.mxu0 %v937
        %1595 = vmatpush1.msra.mxu0 %v936
        %1596 = vmatprep.subr.mxu0 %v941
        %1597 = vmatpush1.msra.mxu0 %v940
        %1598 = vmatprep.subr.mxu0 %v945
        %1599 = vmatpush1.msra.mxu0 %v944
        %1600 = vmatprep.subr.mxu0 %v949
        %1601 = vmatpush1.msra.mxu0 %v948
        %1602 = vmatprep.subr.mxu0 %v953
        %1603 = vmatpush1.msra.mxu0 %v952
        %1604 = vmatprep.subr.mxu0 %v957
        %1605 = vmatpush1.msra.mxu0 %v956
        %1606 = vmatprep.subr.mxu0 %v961
        %1607 = vmatpush1.msra.mxu0 %v960
        %1608 = vmatprep.subr.mxu0 %v965
        %1609 = vmatpush1.msra.mxu0 %v964
        %1610 = vmatprep.subr.mxu0 %v969
        %1611 = vmatpush1.msra.mxu0 %v968
        %1612 = vmatprep.subr.mxu0 %v973
        %1613 = vmatpush1.msra.mxu0 %v972
        %1614 = vmatprep.subr.mxu0 %v977
        %1615 = vmatpush1.msra.mxu0 %v976
        %1616 = vmatprep.subr.mxu0 %v981
        %1617 = vmatpush1.msra.mxu0 %v980
        %1618 = vmatprep.subr.mxu0 %v985
        %1619 = vmatpush1.msra.mxu0 %v984
        %1620 = vmatprep.subr.mxu0 %v989
        %1621 = vmatpush1.msra.mxu0 %v988
        %1622 = vmatprep.subr.mxu0 %v993
        %1623 = vmatpush1.msra.mxu0 %v992
        %1624 = vmatprep.subr.mxu0 %v997
        %1625 = vmatpush1.msra.mxu0 %v996
        %1626 = vmatprep.subr.mxu0 %v1001
        %1627 = vmatpush1.msra.mxu0 %v1000
        %1628 = vmatprep.subr.mxu0 %v1005
        %1629 = vmatpush1.msra.mxu0 %v1004
        %1630 = vmatprep.subr.mxu0 %v1009
        %1631 = vmatpush1.msra.mxu0 %v1008
        %1632 = vmatprep.subr.mxu0 %v1013
        %1633 = vmatpush1.msra.mxu0 %v1012
        %1634 = vmatprep.subr.mxu0 %v1017
        %1635 = vmatpush1.msra.mxu0 %v1016
        %1636 = vmatprep.mubr.f32.mxu0 %v631
        %1637 = vmatmul.mubr.f32.gmra.mrb[0].mxu0 %v630
        %v1638 = vpop.f32.mrb[0].mxu0
        %v1639 = vadd.f32 %v1568, %v1638
        %v1640 = vpop.f32.mrb[0].mxu0
        %v1641 = vadd.f32 %v1570, %v1640
        %1642 = vdwg.mxu0
        %1643 = vmatprep.subr.mxu0 %v1021
        %1644 = vmatpush1.msra.mxu0 %v1020
        %1645 = vmatprep.subr.mxu0 %v1025
        %1646 = vmatpush1.msra.mxu0 %v1024
        %1647 = vmatprep.subr.mxu0 %v1029
        %1648 = vmatpush1.msra.mxu0 %v1028
        %1649 = vmatprep.subr.mxu0 %v1033
        %1650 = vmatpush1.msra.mxu0 %v1032
        %1651 = vmatprep.subr.mxu0 %v1037
        %1652 = vmatpush1.msra.mxu0 %v1036
        %1653 = vmatprep.subr.mxu0 %v1041
        %1654 = vmatpush1.msra.mxu0 %v1040
        %1655 = vmatprep.subr.mxu0 %v1045
        %1656 = vmatpush1.msra.mxu0 %v1044
        %1657 = vmatprep.subr.mxu0 %v1049
        %1658 = vmatpush1.msra.mxu0 %v1048
        %1659 = vmatprep.subr.mxu0 %v1053
        %1660 = vmatpush1.msra.mxu0 %v1052
        %1661 = vmatprep.subr.mxu0 %v1057
        %1662 = vmatpush1.msra.mxu0 %v1056
        %1663 = vmatprep.subr.mxu0 %v1061
        %1664 = vmatpush1.msra.mxu0 %v1060
        %1665 = vmatprep.subr.mxu0 %v1065
        %1666 = vmatpush1.msra.mxu0 %v1064
        %1667 = vmatprep.subr.mxu0 %v1069
        %1668 = vmatpush1.msra.mxu0 %v1068
        %1669 = vmatprep.subr.mxu0 %v1073
        %1670 = vmatpush1.msra.mxu0 %v1072
        %1671 = vmatprep.subr.mxu0 %v1077
        %1672 = vmatpush1.msra.mxu0 %v1076
        %1673 = vmatprep.subr.mxu0 %v1081
        %1674 = vmatpush1.msra.mxu0 %v1080
        %1675 = vmatprep.subr.mxu0 %v1085
        %1676 = vmatpush1.msra.mxu0 %v1084
        %1677 = vmatprep.subr.mxu0 %v1089
        %1678 = vmatpush1.msra.mxu0 %v1088
        %1679 = vmatprep.subr.mxu0 %v1093
        %1680 = vmatpush1.msra.mxu0 %v1092
        %1681 = vmatprep.subr.mxu0 %v1097
        %1682 = vmatpush1.msra.mxu0 %v1096
        %1683 = vmatprep.subr.mxu0 %v1101
        %1684 = vmatpush1.msra.mxu0 %v1100
        %1685 = vmatprep.subr.mxu0 %v1105
        %1686 = vmatpush1.msra.mxu0 %v1104
        %1687 = vmatprep.subr.mxu0 %v1109
        %1688 = vmatpush1.msra.mxu0 %v1108
        %1689 = vmatprep.subr.mxu0 %v1113
        %1690 = vmatpush1.msra.mxu0 %v1112
        %1691 = vmatprep.subr.mxu0 %v1117
        %1692 = vmatpush1.msra.mxu0 %v1116
        %1693 = vmatprep.subr.mxu0 %v1121
        %1694 = vmatpush1.msra.mxu0 %v1120
        %1695 = vmatprep.subr.mxu0 %v1125
        %1696 = vmatpush1.msra.mxu0 %v1124
        %1697 = vmatprep.subr.mxu0 %v1129
        %1698 = vmatpush1.msra.mxu0 %v1128
        %1699 = vmatprep.subr.mxu0 %v1133
        %1700 = vmatpush1.msra.mxu0 %v1132
        %1701 = vmatprep.subr.mxu0 %v1137
        %1702 = vmatpush1.msra.mxu0 %v1136
        %1703 = vmatprep.subr.mxu0 %v1141
        %1704 = vmatpush1.msra.mxu0 %v1140
        %1705 = vmatprep.subr.mxu0 %v1145
        %1706 = vmatpush1.msra.mxu0 %v1144
        %1707 = vmatprep.mubr.f32.mxu0 %v633
        %1708 = vmatmul.mubr.f32.gmra.mrb[0].mxu0 %v632
        %v1709 = vpop.f32.mrb[0].mxu0
        %v1710 = vadd.f32 %v1639, %v1709
        %v1711 = vpop.f32.mrb[0].mxu0
        %v1712 = vadd.f32 %v1641, %v1711
        %1713 = vdwg.mxu0
        %s1714 = sld [smem:[#allocation12]]
        %v1715 = vstv %s1714
        %v1716 = vmul.f32 %v1426, %v1715
        %v1717 = vmul.f32 %v1428, %v1715
        %v1718 = vmul.f32 %v1710, %v1715
        %v1719 = vmul.f32 %v1712, %v1715
        %s1720 = sld [smem:[#allocation12 + $0x1]]
        %v1721 = vstv %s1720
        %v1722 = vadd.f32 %v1716, %v1721
        %v1723 = vadd.f32 %v1717, %v1721
        %v1724 = vadd.f32 %v1718, %v1721
        %v1725 = vadd.f32 %v1719, %v1721
        %v1726 = vlaneseq
        %v1727 = vshrl.u32 %v1726, 7
        %v1728 = vsub.s32 0, %v1727
        %v1729 = vrot.slane %v1722, %v1728
        %v1730 = vlaneseq
        %v1731 = vshrl.u32 %v1730, 7
        %v1732 = vsub.s32 0, %v1731
        %v1733 = vrot.slane %v1723, %v1732
        %v1734 = vlaneseq
        %v1735 = vshrl.u32 %v1734, 7
        %v1736 = vsub.s32 0, %v1735
        %v1737 = vrot.slane %v1724, %v1736
        %v1738 = vlaneseq
        %v1739 = vshrl.u32 %v1738, 7
        %v1740 = vsub.s32 0, %v1739
        %v1741 = vrot.slane %v1725, %v1740
        %v1742 = vmul.f32 %v565, %v1729
        %v1743 = vmul.f32 %v566, %v1733
        %v1744 = vmul.f32 %v567, %v1737
        %v1745 = vmul.f32 %v568, %v1741
        %v1746 = vmul.f32 %v569, %v1729
        %v1747 = vmul.f32 %v570, %v1733
        %v1748 = vmul.f32 %v571, %v1737
        %v1749 = vmul.f32 %v572, %v1741
        %1750 = vst [vmem:[%s360] sm:$0xff] %v1742
        %1751 = vst [vmem:[%s360 + $0x8] sm:$0xff] %v1743
        %1752 = vst [vmem:[%s360 + $0x10] sm:$0xff] %v1744
        %1753 = vst [vmem:[%s360 + $0x18] sm:$0xff] %v1745
        %1754 = vst [vmem:[%s360 + $0x20] sm:$0xff] %v1746
        %1755 = vst [vmem:[%s360 + $0x28] sm:$0xff] %v1747
        %1756 = vst [vmem:[%s360 + $0x30] sm:$0xff] %v1748
        %1757 = vst [vmem:[%s360 + $0x38] sm:$0xff] %v1749
        %s1758 = sand.u32 %s187, 1
        %s1759 = scalar_lea.sflag [#allocation4], %s1758
        %s1760 = sand.u32 %s187, 1
        %s1761 = smul.addr %s1760, 64
        %s1762 = scalar_lea.vmem [#allocation13], %s1761
        // Predicated region
        $region73: #{tpu_custom_call.1} parent=47 // pred_check
          %p1763 = pneg %p197
        $region74: #{tpu_custom_call.1} parent=47 // pred_check_branch
          %1765 = sbr.rel (%p1763) target = $region76
        $region75: #{tpu_custom_call.1} parent=47 // pred_region
          %s1767 = ssub.s32 1024, 1024
          %1768 = vsyncadd %s1759, %s1767
          %s1769 = smul.addr %s27, 8
          %s1770 = smul.addr %s1769, 128
          %s1771 = scalar_lea.hbm %s7, %s1770
          %s1772 = sshll.u32 %s1762, 4
          %s1773 = int_to_ptr.vmem [resolvable:$true] %s1772
          %1778 = dma.vmem_to_hbm [thread:$0]  %s1773, 1024, %s1771, %s1759, 512, 512, 32
        $region76: #{tpu_custom_call.1} parent=47 // pred_fallthru
          _
      $region48: #{tpu_custom_call.1} parent=5 // pred_fallthru
        _
      %p1779 = scmp.le.s32.totalorder 2, %s22
      // Predicated region
      $region77: #{tpu_custom_call.1} parent=5 // pred_check
        %p1780 = pneg %p1779
      $region78: #{tpu_custom_call.1} parent=5 // pred_check_branch
        %1782 = sbr.rel (%p1780) target = $region80
      $region79: #{tpu_custom_call.1} parent=5 // pred_region
        %s1783 = ssub.s32 %s22, 2
        // Predicated region
        $region81: #{tpu_custom_call.1} parent=79 // pred_check
          %p1784 = pneg %p203
        $region82: #{tpu_custom_call.1} parent=79 // pred_check_branch
          %1786 = sbr.rel (%p1784) target = $region84
        $region83: #{tpu_custom_call.1} parent=79 // pred_region
          %s1787 = sand.u32 %s188, 1
          %s1788 = scalar_lea.sflag [#allocation4], %s1787
          %s1789 = sand.u32 %s188, 1
          %s1790 = smul.addr %s1789, 64
          %s1791 = scalar_lea.vmem [#allocation13], %s1790
          %1792 = dma.done %s1788, 1024
        $region84: #{tpu_custom_call.1} parent=79 // pred_fallthru
          _
      $region80: #{tpu_custom_call.1} parent=5 // pred_fallthru
        _
    $region6: #{tpu_custom_call.1} parent=1 // loop_footer
      %s26 = sadd.s32 1, %s22
    $region7: #{tpu_custom_call.1} parent=1 // loop_footer_branch
      %21 = sbr.rel target = $region3
    $region8: #{tpu_custom_call.1} parent=1 // loop_exit
      _
    %1793 = vsyncpa [#allocation3], 1
    %s1794 = scalar_lea.sflag [#allocation3], 1
    %1795 = vsyncpa %s1794, 1
    %1796 = vsyncpa [#allocation7], 1
    %1797 = vsyncpa [#allocation10], 1
    %1798 = vsyncpa [#allocation4], 1
    %s1799 = scalar_lea.sflag [#allocation4], 1
    %1800 = vsyncpa %s1799, 1
    %1801 = vsyncpa [#allocation5], 1
    %s1802 = scalar_lea.sflag [#allocation5], 1
    %1803 = vsyncpa %s1802, 1

</llo_original>
